<compile_context>
chip_gen: v7x
topology: tpu7x:2x2x1
jax: 0.10.0
libtpu: 0.0.40
codegen_flags: <defaults>
</compile_context>

<pallas_src>
import jax
import jax.numpy as jnp
from jax.experimental import pallas as pl
from jax.experimental.pallas import tpu as pltpu

H = 64          # LSTM hidden size (fixed by the module)
H4 = 4 * H      # fused gate width (256)

# Column layout inside the packed tail slabs (w_tail: (64,128), b_tail: (1,128))
_W1 = (0, 32)     # dense1  (64, 32) rows 0:64   / bias (1, 32)
_W2 = (32, 44)    # dense2  (32, 12) rows 0:32   / bias (1, 12)
_WG1 = (44, 56)   # gcn1    (12, 12) rows 0:12   / bias (1, 12)
_WG2 = (56, 68)   # gcn2    (12, 12) rows 0:12   / bias (1, 12)
_WO = (68, 69)    # output  (12, 1)  rows 0:12   / bias (1, 1)
_TAIL_LANES = 128


def lstmgcn_kernel(
    x_ref,       # (T*B, D)  time-major flattened input
    adj_ref,     # (B, B)
    wih_ref,     # (D, 4H)   fused input->hidden weights, gate order i|f|o|g
    whh_ref,     # (H, 4H)   fused hidden->hidden weights, gate order i|f|o|g
    blstm_ref,   # (1, 4H)   fused bias (b_ih + b_hh), gate order i|f|o|g
    wt_ref,      # (64, 128) packed tail weights (see _W* layout above)
    bt_ref,      # (1, 128)  packed tail biases
    out_ref,     # (B, 12)
    proj_ref,    # VMEM scratch (T*B, 4H): hoisted input projection
):
    B = adj_ref.shape[0]
    TB = x_ref.shape[0]
    T = TB // B

    # ---- Hoisted input projection: one matmul for all timesteps. ----
    proj_ref[...] = (
        jnp.dot(x_ref[...], wih_ref[...], preferred_element_type=jnp.float32)
        + blstm_ref[...]
    )

    w_hh = whh_ref[...]  # loaded once, reused across all unrolled steps

    def step(t, carry):
        h, c = carry
        start = t * B
        if B % 8 == 0:                      # static hint: sublane-aligned slice
            start = pl.multiple_of(start, 8)
        p_t = proj_ref[pl.ds(start, B), :]  # (B, 4H) precomputed x_t @ W_ih + b
        gates = jnp.dot(h, w_hh, preferred_element_type=jnp.float32) + p_t
        # Packed gate order is i | f | o | g -> one sigmoid on the (B,3H) slab.
        ifo = jax.nn.sigmoid(gates[:, 0:3 * H])
        g = jnp.tanh(gates[:, 3 * H:4 * H])
        i_g = ifo[:, 0:H]
        f_g = ifo[:, H:2 * H]
        o_g = ifo[:, 2 * H:3 * H]
        c_new = f_g * c + i_g * g
        h_new = o_g * jnp.tanh(c_new)
        return h_new, c_new

    h0 = jnp.zeros((B, H), jnp.float32)
    c0 = jnp.zeros((B, H), jnp.float32)
    # T is static and small -> fully unroll so the scheduler overlaps steps.
    h_last, _ = jax.lax.fori_loop(0, T, step, (h0, c0), unroll=True)

    # ---- Dense Layer 1 (tanh), Dense Layer 2 (tanh) ----
    d1 = jnp.tanh(
        jnp.dot(h_last, wt_ref[:, _W1[0]:_W1[1]],
                preferred_element_type=jnp.float32)
        + bt_ref[:, _W1[0]:_W1[1]])                                  # (B, 32)
    d2 = jnp.tanh(
        jnp.dot(d1, wt_ref[0:32, _W2[0]:_W2[1]],
                preferred_element_type=jnp.float32)
        + bt_ref[:, _W2[0]:_W2[1]])                                  # (B, 12)

    adj = adj_ref[...]

    # ---- GCN layer 1: relu(adj @ (d2 @ W + b)); dropout(p=0) = identity ----
    s1 = (jnp.dot(d2, wt_ref[0:12, _WG1[0]:_WG1[1]],
                  preferred_element_type=jnp.float32)
          + bt_ref[:, _WG1[0]:_WG1[1]])
    g1 = jnp.maximum(jnp.dot(adj, s1, preferred_element_type=jnp.float32), 0.0)

    # ---- GCN layer 2 (no activation), then log-softmax over dim=1 ----
    s2 = (jnp.dot(g1, wt_ref[0:12, _WG2[0]:_WG2[1]],
                  preferred_element_type=jnp.float32)
          + bt_ref[:, _WG2[0]:_WG2[1]])
    g2 = jnp.dot(adj, s2, preferred_element_type=jnp.float32)        # (B, 12)

    m = jnp.max(g2, axis=1, keepdims=True)
    lse = m + jnp.log(jnp.sum(jnp.exp(g2 - m), axis=1, keepdims=True))
    logsm = g2 - lse                                                 # (B, 12)

    # ---- Output layer (12 -> 1), broadcast-add dense2_out: (B,1)+(B,12) ----
    out1 = (jnp.dot(logsm, wt_ref[0:12, _WO[0]:_WO[1]],
                    preferred_element_type=jnp.float32)
            + bt_ref[:, _WO[0]:_WO[1]])                              # (B, 1)
    out_ref[...] = out1 + d2


# --------------------------------------------------------------------------
# Parameters: raw (per-gate / per-layer, PyTorch-equivalent layout) + packing.
# --------------------------------------------------------------------------
def init_raw_params(key, input_size):
    """Deterministic synthetic parameters; layouts mirror the PyTorch module
    (LSTM gate order i, f, g, o; weights pre-transposed to (in_dim, out_dim))."""
    ks = iter(jax.random.split(key, 32))

    def rnd(shape, scale=0.1):
        return jax.random.normal(next(ks), shape, jnp.float32) * scale

    raw = {
        # LSTM, gate order i, f, g, o (as in torch.nn.LSTM)
        "w_ih": [rnd((input_size, H)) for _ in range(4)],
        "w_hh": [rnd((H, H)) for _ in range(4)],
        "b":    [rnd((1, H)) for _ in range(4)],   # b_ih + b_hh merged
        # Dense layers
        "w1": rnd((H, 32)),   "b1": rnd((1, 32)),
        "w2": rnd((32, 12)),  "b2": rnd((1, 12)),
        # GCN layers
        "wg1": rnd((12, 12)), "bg1": rnd((1, 12)),
        "wg2": rnd((12, 12)), "bg2": rnd((1, 12)),
        # Output layer
        "wo": rnd((12, 1)),   "bo": rnd((1, 1)),
    }
    return raw


def pack_params(raw):
    """Pack per-gate/per-layer params into the fused layout the kernel expects."""
    # Reorder PyTorch gate order (i, f, g, o) -> kernel order (i, f, o, g) so
    # the sigmoid gates are contiguous.  Must match the in-kernel slicing.
    order = (0, 1, 3, 2)
    w_ih = jnp.concatenate([raw["w_ih"][k] for k in order], axis=1)   # (D, 4H)
    w_hh = jnp.concatenate([raw["w_hh"][k] for k in order], axis=1)   # (H, 4H)
    b_lstm = jnp.concatenate([raw["b"][k] for k in order], axis=1)    # (1, 4H)

    wt = jnp.zeros((H, _TAIL_LANES), jnp.float32)
    wt = wt.at[:, _W1[0]:_W1[1]].set(raw["w1"])
    wt = wt.at[0:32, _W2[0]:_W2[1]].set(raw["w2"])
    wt = wt.at[0:12, _WG1[0]:_WG1[1]].set(raw["wg1"])
    wt = wt.at[0:12, _WG2[0]:_WG2[1]].set(raw["wg2"])
    wt = wt.at[0:12, _WO[0]:_WO[1]].set(raw["wo"])

    bt = jnp.zeros((1, _TAIL_LANES), jnp.float32)
    bt = bt.at[:, _W1[0]:_W1[1]].set(raw["b1"])
    bt = bt.at[:, _W2[0]:_W2[1]].set(raw["b2"])
    bt = bt.at[:, _WG1[0]:_WG1[1]].set(raw["bg1"])
    bt = bt.at[:, _WG2[0]:_WG2[1]].set(raw["bg2"])
    bt = bt.at[:, _WO[0]:_WO[1]].set(raw["bo"])

    return {"w_ih": w_ih, "w_hh": w_hh, "b_lstm": b_lstm,
            "w_tail": wt, "b_tail": bt}


def lstmgcn_forward(x, adj, packed):
    """x: (B, T, D) float32, adj: (B, B) float32 -> (B, 12) float32."""
    B, T, D = x.shape
    # Time-major flatten: rows [t*B:(t+1)*B] of x_flat are timestep t.
    x_flat = jnp.transpose(x, (1, 0, 2)).reshape(T * B, D)

    vmem = pl.BlockSpec(memory_space=pltpu.MemorySpace.VMEM)
    args = (x_flat, adj, packed["w_ih"], packed["w_hh"], packed["b_lstm"],
            packed["w_tail"], packed["b_tail"])

    # TODO(synk): if the node count ever scales up, switch adj/x to
    # memory_space=pl.ANY with tiled DMA instead of full-array VMEM blocks.
    return pl.pallas_call(
        lstmgcn_kernel,
        out_shape=jax.ShapeDtypeStruct((B, 12), jnp.float32),
        in_specs=[vmem] * len(args),
        out_specs=vmem,
        scratch_shapes=[pltpu.VMEM((T * B, H4), jnp.float32)],
    )(*args)


# --------------------------------------------------------------------------
# Pure-JAX reference (uses the raw, unpacked params in PyTorch gate order).
# --------------------------------------------------------------------------
def lstmgcn_reference(x, adj, raw):
    B, T, D = x.shape
    h = jnp.zeros((B, H), jnp.float32)
    c = jnp.zeros((B, H), jnp.float32)
    for t in range(T):
        xt = x[:, t, :]
        gates = [xt @ raw["w_ih"][k] + h @ raw["w_hh"][k] + raw["b"][k]
                 for k in range(4)]
        i_g = jax.nn.sigmoid(gates[0])
        f_g = jax.nn.sigmoid(gates[1])
        g_g = jnp.tanh(gates[2])
        o_g = jax.nn.sigmoid(gates[3])
        c = f_g * c + i_g * g_g
        h = o_g * jnp.tanh(c)
    d1 = jnp.tanh(h @ raw["w1"] + raw["b1"])
    d2 = jnp.tanh(d1 @ raw["w2"] + raw["b2"])
    g1 = jnp.maximum(adj @ (d2 @ raw["wg1"] + raw["bg1"]), 0.0)
    g2 = adj @ (g1 @ raw["wg2"] + raw["bg2"])
    logsm = jax.nn.log_softmax(g2, axis=1)
    return (logsm @ raw["wo"] + raw["bo"]) + d2


if __name__ == "__main__":
    key = jax.random.PRNGKey(0)
    k_x, k_adj, k_p = jax.random.split(key, 3)

    # batch == num_nodes (the GCN mixes across the batch axis via adj)
    B, T, D = 8, 8, 4
    x = jax.random.normal(k_x, (B, T, D), jnp.float32)

    # Simple symmetric row-normalized adjacency (dense stand-in for sparse adj)
    a = jax.random.uniform(k_adj, (B, B), jnp.float32)
    a = (a + a.T) * 0.5 + jnp.eye(B, dtype=jnp.float32)
    adj = a / jnp.sum(a, axis=1, keepdims=True)

    raw = init_raw_params(k_p, D)
    packed = pack_params(raw)

    out = lstmgcn_forward(x, adj, packed)
    out = jax.block_until_ready(out)
    assert out.shape == (B, 12)

    ref = lstmgcn_reference(x, adj, raw)
    assert jnp.allclose(out, ref, atol=1e-4, rtol=1e-4), float(
        jnp.max(jnp.abs(out - ref)))

    print("KERNEL_OK")
</pallas_src>

<mosaic_0001>
module attributes {stable_mosaic.version = 11 : i64} {
  func.func @lstmgcn_kernel(%arg0: memref<64x4xf32, #tpu.memory_space<vmem>>, %arg1: memref<8x8xf32, #tpu.memory_space<vmem>>, %arg2: memref<4x256xf32, #tpu.memory_space<vmem>>, %arg3: memref<64x256xf32, #tpu.memory_space<vmem>>, %arg4: memref<1x256xf32, #tpu.memory_space<vmem>>, %arg5: memref<64x128xf32, #tpu.memory_space<vmem>>, %arg6: memref<1x128xf32, #tpu.memory_space<vmem>>, %arg7: memref<8x12xf32, #tpu.memory_space<vmem>>, %arg8: memref<64x256xf32, #tpu.memory_space<vmem>>) attributes {dimension_semantics = [], scalar_prefetch = 0 : i64, scratch_operands = 1 : i64, tpu.core_type = #tpu.core_type<tc>} {
    %c0 = arith.constant 0 : index
    %c0_0 = arith.constant 0 : index
    %0 = vector.load %arg0[%c0, %c0_0] : memref<64x4xf32, #tpu.memory_space<vmem>>, vector<64x4xf32>
    %c0_1 = arith.constant 0 : index
    %c0_2 = arith.constant 0 : index
    %1 = vector.load %arg2[%c0_1, %c0_2] : memref<4x256xf32, #tpu.memory_space<vmem>>, vector<4x256xf32>
    %cst = arith.constant dense<0.000000e+00> : vector<64x256xf32>
    %2 = tpu.matmul %0, %1, %cst {dimension_numbers = #tpu.dot_dimension_numbers<[1], [0], [0], [1], [0, 0, 1, 1], [], []>} : vector<64x4xf32>, vector<4x256xf32>, vector<64x256xf32> -> vector<64x256xf32>
    %c0_3 = arith.constant 0 : index
    %c0_4 = arith.constant 0 : index
    %3 = vector.load %arg4[%c0_3, %c0_4] : memref<1x256xf32, #tpu.memory_space<vmem>>, vector<1x256xf32>
    %4 = vector.broadcast %3 : vector<1x256xf32> to vector<64x256xf32>
    %5 = arith.addf %2, %4 : vector<64x256xf32>
    %c0_5 = arith.constant 0 : index
    %c0_6 = arith.constant 0 : index
    %6 = vector.load %arg8[%c0_5, %c0_6] : memref<64x256xf32, #tpu.memory_space<vmem>>, vector<64x256xf32>
    tpu.vector_store %arg8[%c0_5, %c0_6], %5 {strides = array<i32>} : memref<64x256xf32, #tpu.memory_space<vmem>>, vector<64x256xf32>,
    %c0_7 = arith.constant 0 : index
    %c0_8 = arith.constant 0 : index
    %7 = vector.load %arg3[%c0_7, %c0_8] : memref<64x256xf32, #tpu.memory_space<vmem>>, vector<64x256xf32>
    %cst_9 = arith.constant 0.000000e+00 : f32
    %8 = vector.broadcast %cst_9 : f32 to vector<8x64xf32>
    %cst_10 = arith.constant 0.000000e+00 : f32
    %9 = vector.broadcast %cst_10 : f32 to vector<8x64xf32>
    %c0_i32 = arith.constant 0 : i32
    %c8_i32 = arith.constant 8 : i32
    %10 = arith.muli %c0_i32, %c8_i32 : i32
    %11 = tpu.assume_multiple %10, 8 : i32
    %12 = arith.index_cast %11 : i32 to index
    %c0_11 = arith.constant 0 : index
    %13 = vector.load %arg8[%12, %c0_11] : memref<64x256xf32, #tpu.memory_space<vmem>>, vector<8x256xf32>
    %cst_12 = arith.constant dense<0.000000e+00> : vector<8x256xf32>
    %14 = tpu.matmul %8, %7, %cst_12 {dimension_numbers = #tpu.dot_dimension_numbers<[1], [0], [0], [1], [0, 0, 1, 1], [], []>} : vector<8x64xf32>, vector<64x256xf32>, vector<8x256xf32> -> vector<8x256xf32>
    %15 = arith.addf %14, %13 : vector<8x256xf32>
    %16 = vector.extract_strided_slice %15 {offsets = [0, 0], sizes = [8, 192], strides = [1, 1]} : vector<8x256xf32> to vector<8x192xf32>
    %17 = arith.negf %16 : vector<8x192xf32>
    %18 = math.exp %17 : vector<8x192xf32>
    %cst_13 = arith.constant 1.000000e+00 : f32
    %19 = vector.broadcast %cst_13 : f32 to vector<8x192xf32>
    %20 = arith.addf %19, %18 : vector<8x192xf32>
    %21 = arith.divf %19, %20 : vector<8x192xf32>
    %22 = vector.extract_strided_slice %15 {offsets = [0, 192], sizes = [8, 64], strides = [1, 1]} : vector<8x256xf32> to vector<8x64xf32>
    %23 = math.tanh %22 : vector<8x64xf32>
    %24 = vector.extract_strided_slice %21 {offsets = [0, 0], sizes = [8, 64], strides = [1, 1]} : vector<8x192xf32> to vector<8x64xf32>
    %25 = vector.extract_strided_slice %21 {offsets = [0, 64], sizes = [8, 64], strides = [1, 1]} : vector<8x192xf32> to vector<8x64xf32>
    %26 = vector.extract_strided_slice %21 {offsets = [0, 128], sizes = [8, 64], strides = [1, 1]} : vector<8x192xf32> to vector<8x64xf32>
    %27 = arith.mulf %25, %9 : vector<8x64xf32>
    %28 = arith.mulf %24, %23 : vector<8x64xf32>
    %29 = arith.addf %27, %28 : vector<8x64xf32>
    %30 = math.tanh %29 : vector<8x64xf32>
    %31 = arith.mulf %26, %30 : vector<8x64xf32>
    %c1_i32 = arith.constant 1 : i32
    %c8_i32_14 = arith.constant 8 : i32
    %32 = arith.muli %c1_i32, %c8_i32_14 : i32
    %33 = tpu.assume_multiple %32, 8 : i32
    %34 = arith.index_cast %33 : i32 to index
    %c0_15 = arith.constant 0 : index
    %35 = vector.load %arg8[%34, %c0_15] : memref<64x256xf32, #tpu.memory_space<vmem>>, vector<8x256xf32>
    %cst_16 = arith.constant dense<0.000000e+00> : vector<8x256xf32>
    %36 = tpu.matmul %31, %7, %cst_16 {dimension_numbers = #tpu.dot_dimension_numbers<[1], [0], [0], [1], [0, 0, 1, 1], [], []>} : vector<8x64xf32>, vector<64x256xf32>, vector<8x256xf32> -> vector<8x256xf32>
    %37 = arith.addf %36, %35 : vector<8x256xf32>
    %38 = vector.extract_strided_slice %37 {offsets = [0, 0], sizes = [8, 192], strides = [1, 1]} : vector<8x256xf32> to vector<8x192xf32>
    %39 = arith.negf %38 : vector<8x192xf32>
    %40 = math.exp %39 : vector<8x192xf32>
    %cst_17 = arith.constant 1.000000e+00 : f32
    %41 = vector.broadcast %cst_17 : f32 to vector<8x192xf32>
    %42 = arith.addf %41, %40 : vector<8x192xf32>
    %43 = arith.divf %41, %42 : vector<8x192xf32>
    %44 = vector.extract_strided_slice %37 {offsets = [0, 192], sizes = [8, 64], strides = [1, 1]} : vector<8x256xf32> to vector<8x64xf32>
    %45 = math.tanh %44 : vector<8x64xf32>
    %46 = vector.extract_strided_slice %43 {offsets = [0, 0], sizes = [8, 64], strides = [1, 1]} : vector<8x192xf32> to vector<8x64xf32>
    %47 = vector.extract_strided_slice %43 {offsets = [0, 64], sizes = [8, 64], strides = [1, 1]} : vector<8x192xf32> to vector<8x64xf32>
    %48 = vector.extract_strided_slice %43 {offsets = [0, 128], sizes = [8, 64], strides = [1, 1]} : vector<8x192xf32> to vector<8x64xf32>
    %49 = arith.mulf %47, %29 : vector<8x64xf32>
    %50 = arith.mulf %46, %45 : vector<8x64xf32>
    %51 = arith.addf %49, %50 : vector<8x64xf32>
    %52 = math.tanh %51 : vector<8x64xf32>
    %53 = arith.mulf %48, %52 : vector<8x64xf32>
    %c2_i32 = arith.constant 2 : i32
    %c8_i32_18 = arith.constant 8 : i32
    %54 = arith.muli %c2_i32, %c8_i32_18 : i32
    %55 = tpu.assume_multiple %54, 8 : i32
    %56 = arith.index_cast %55 : i32 to index
    %c0_19 = arith.constant 0 : index
    %57 = vector.load %arg8[%56, %c0_19] : memref<64x256xf32, #tpu.memory_space<vmem>>, vector<8x256xf32>
    %cst_20 = arith.constant dense<0.000000e+00> : vector<8x256xf32>
    %58 = tpu.matmul %53, %7, %cst_20 {dimension_numbers = #tpu.dot_dimension_numbers<[1], [0], [0], [1], [0, 0, 1, 1], [], []>} : vector<8x64xf32>, vector<64x256xf32>, vector<8x256xf32> -> vector<8x256xf32>
    %59 = arith.addf %58, %57 : vector<8x256xf32>
    %60 = vector.extract_strided_slice %59 {offsets = [0, 0], sizes = [8, 192], strides = [1, 1]} : vector<8x256xf32> to vector<8x192xf32>
    %61 = arith.negf %60 : vector<8x192xf32>
    %62 = math.exp %61 : vector<8x192xf32>
    %cst_21 = arith.constant 1.000000e+00 : f32
    %63 = vector.broadcast %cst_21 : f32 to vector<8x192xf32>
    %64 = arith.addf %63, %62 : vector<8x192xf32>
    %65 = arith.divf %63, %64 : vector<8x192xf32>
    %66 = vector.extract_strided_slice %59 {offsets = [0, 192], sizes = [8, 64], strides = [1, 1]} : vector<8x256xf32> to vector<8x64xf32>
    %67 = math.tanh %66 : vector<8x64xf32>
    %68 = vector.extract_strided_slice %65 {offsets = [0, 0], sizes = [8, 64], strides = [1, 1]} : vector<8x192xf32> to vector<8x64xf32>
    %69 = vector.extract_strided_slice %65 {offsets = [0, 64], sizes = [8, 64], strides = [1, 1]} : vector<8x192xf32> to vector<8x64xf32>
    %70 = vector.extract_strided_slice %65 {offsets = [0, 128], sizes = [8, 64], strides = [1, 1]} : vector<8x192xf32> to vector<8x64xf32>
    %71 = arith.mulf %69, %51 : vector<8x64xf32>
    %72 = arith.mulf %68, %67 : vector<8x64xf32>
    %73 = arith.addf %71, %72 : vector<8x64xf32>
    %74 = math.tanh %73 : vector<8x64xf32>
    %75 = arith.mulf %70, %74 : vector<8x64xf32>
    %c3_i32 = arith.constant 3 : i32
    %c8_i32_22 = arith.constant 8 : i32
    %76 = arith.muli %c3_i32, %c8_i32_22 : i32
    %77 = tpu.assume_multiple %76, 8 : i32
    %78 = arith.index_cast %77 : i32 to index
    %c0_23 = arith.constant 0 : index
    %79 = vector.load %arg8[%78, %c0_23] : memref<64x256xf32, #tpu.memory_space<vmem>>, vector<8x256xf32>
    %cst_24 = arith.constant dense<0.000000e+00> : vector<8x256xf32>
    %80 = tpu.matmul %75, %7, %cst_24 {dimension_numbers = #tpu.dot_dimension_numbers<[1], [0], [0], [1], [0, 0, 1, 1], [], []>} : vector<8x64xf32>, vector<64x256xf32>, vector<8x256xf32> -> vector<8x256xf32>
    %81 = arith.addf %80, %79 : vector<8x256xf32>
    %82 = vector.extract_strided_slice %81 {offsets = [0, 0], sizes = [8, 192], strides = [1, 1]} : vector<8x256xf32> to vector<8x192xf32>
    %83 = arith.negf %82 : vector<8x192xf32>
    %84 = math.exp %83 : vector<8x192xf32>
    %cst_25 = arith.constant 1.000000e+00 : f32
    %85 = vector.broadcast %cst_25 : f32 to vector<8x192xf32>
    %86 = arith.addf %85, %84 : vector<8x192xf32>
    %87 = arith.divf %85, %86 : vector<8x192xf32>
    %88 = vector.extract_strided_slice %81 {offsets = [0, 192], sizes = [8, 64], strides = [1, 1]} : vector<8x256xf32> to vector<8x64xf32>
    %89 = math.tanh %88 : vector<8x64xf32>
    %90 = vector.extract_strided_slice %87 {offsets = [0, 0], sizes = [8, 64], strides = [1, 1]} : vector<8x192xf32> to vector<8x64xf32>
    %91 = vector.extract_strided_slice %87 {offsets = [0, 64], sizes = [8, 64], strides = [1, 1]} : vector<8x192xf32> to vector<8x64xf32>
    %92 = vector.extract_strided_slice %87 {offsets = [0, 128], sizes = [8, 64], strides = [1, 1]} : vector<8x192xf32> to vector<8x64xf32>
    %93 = arith.mulf %91, %73 : vector<8x64xf32>
    %94 = arith.mulf %90, %89 : vector<8x64xf32>
    %95 = arith.addf %93, %94 : vector<8x64xf32>
    %96 = math.tanh %95 : vector<8x64xf32>
    %97 = arith.mulf %92, %96 : vector<8x64xf32>
    %c4_i32 = arith.constant 4 : i32
    %c8_i32_26 = arith.constant 8 : i32
    %98 = arith.muli %c4_i32, %c8_i32_26 : i32
    %99 = tpu.assume_multiple %98, 8 : i32
    %100 = arith.index_cast %99 : i32 to index
    %c0_27 = arith.constant 0 : index
    %101 = vector.load %arg8[%100, %c0_27] : memref<64x256xf32, #tpu.memory_space<vmem>>, vector<8x256xf32>
    %cst_28 = arith.constant dense<0.000000e+00> : vector<8x256xf32>
    %102 = tpu.matmul %97, %7, %cst_28 {dimension_numbers = #tpu.dot_dimension_numbers<[1], [0], [0], [1], [0, 0, 1, 1], [], []>} : vector<8x64xf32>, vector<64x256xf32>, vector<8x256xf32> -> vector<8x256xf32>
    %103 = arith.addf %102, %101 : vector<8x256xf32>
    %104 = vector.extract_strided_slice %103 {offsets = [0, 0], sizes = [8, 192], strides = [1, 1]} : vector<8x256xf32> to vector<8x192xf32>
    %105 = arith.negf %104 : vector<8x192xf32>
    %106 = math.exp %105 : vector<8x192xf32>
    %cst_29 = arith.constant 1.000000e+00 : f32
    %107 = vector.broadcast %cst_29 : f32 to vector<8x192xf32>
    %108 = arith.addf %107, %106 : vector<8x192xf32>
    %109 = arith.divf %107, %108 : vector<8x192xf32>
    %110 = vector.extract_strided_slice %103 {offsets = [0, 192], sizes = [8, 64], strides = [1, 1]} : vector<8x256xf32> to vector<8x64xf32>
    %111 = math.tanh %110 : vector<8x64xf32>
    %112 = vector.extract_strided_slice %109 {offsets = [0, 0], sizes = [8, 64], strides = [1, 1]} : vector<8x192xf32> to vector<8x64xf32>
    %113 = vector.extract_strided_slice %109 {offsets = [0, 64], sizes = [8, 64], strides = [1, 1]} : vector<8x192xf32> to vector<8x64xf32>
    %114 = vector.extract_strided_slice %109 {offsets = [0, 128], sizes = [8, 64], strides = [1, 1]} : vector<8x192xf32> to vector<8x64xf32>
    %115 = arith.mulf %113, %95 : vector<8x64xf32>
    %116 = arith.mulf %112, %111 : vector<8x64xf32>
    %117 = arith.addf %115, %116 : vector<8x64xf32>
    %118 = math.tanh %117 : vector<8x64xf32>
    %119 = arith.mulf %114, %118 : vector<8x64xf32>
    %c5_i32 = arith.constant 5 : i32
    %c8_i32_30 = arith.constant 8 : i32
    %120 = arith.muli %c5_i32, %c8_i32_30 : i32
    %121 = tpu.assume_multiple %120, 8 : i32
    %122 = arith.index_cast %121 : i32 to index
    %c0_31 = arith.constant 0 : index
    %123 = vector.load %arg8[%122, %c0_31] : memref<64x256xf32, #tpu.memory_space<vmem>>, vector<8x256xf32>
    %cst_32 = arith.constant dense<0.000000e+00> : vector<8x256xf32>
    %124 = tpu.matmul %119, %7, %cst_32 {dimension_numbers = #tpu.dot_dimension_numbers<[1], [0], [0], [1], [0, 0, 1, 1], [], []>} : vector<8x64xf32>, vector<64x256xf32>, vector<8x256xf32> -> vector<8x256xf32>
    %125 = arith.addf %124, %123 : vector<8x256xf32>
    %126 = vector.extract_strided_slice %125 {offsets = [0, 0], sizes = [8, 192], strides = [1, 1]} : vector<8x256xf32> to vector<8x192xf32>
    %127 = arith.negf %126 : vector<8x192xf32>
    %128 = math.exp %127 : vector<8x192xf32>
    %cst_33 = arith.constant 1.000000e+00 : f32
    %129 = vector.broadcast %cst_33 : f32 to vector<8x192xf32>
    %130 = arith.addf %129, %128 : vector<8x192xf32>
    %131 = arith.divf %129, %130 : vector<8x192xf32>
    %132 = vector.extract_strided_slice %125 {offsets = [0, 192], sizes = [8, 64], strides = [1, 1]} : vector<8x256xf32> to vector<8x64xf32>
    %133 = math.tanh %132 : vector<8x64xf32>
    %134 = vector.extract_strided_slice %131 {offsets = [0, 0], sizes = [8, 64], strides = [1, 1]} : vector<8x192xf32> to vector<8x64xf32>
    %135 = vector.extract_strided_slice %131 {offsets = [0, 64], sizes = [8, 64], strides = [1, 1]} : vector<8x192xf32> to vector<8x64xf32>
    %136 = vector.extract_strided_slice %131 {offsets = [0, 128], sizes = [8, 64], strides = [1, 1]} : vector<8x192xf32> to vector<8x64xf32>
    %137 = arith.mulf %135, %117 : vector<8x64xf32>
    %138 = arith.mulf %134, %133 : vector<8x64xf32>
    %139 = arith.addf %137, %138 : vector<8x64xf32>
    %140 = math.tanh %139 : vector<8x64xf32>
    %141 = arith.mulf %136, %140 : vector<8x64xf32>
    %c6_i32 = arith.constant 6 : i32
    %c8_i32_34 = arith.constant 8 : i32
    %142 = arith.muli %c6_i32, %c8_i32_34 : i32
    %143 = tpu.assume_multiple %142, 8 : i32
    %144 = arith.index_cast %143 : i32 to index
    %c0_35 = arith.constant 0 : index
    %145 = vector.load %arg8[%144, %c0_35] : memref<64x256xf32, #tpu.memory_space<vmem>>, vector<8x256xf32>
    %cst_36 = arith.constant dense<0.000000e+00> : vector<8x256xf32>
    %146 = tpu.matmul %141, %7, %cst_36 {dimension_numbers = #tpu.dot_dimension_numbers<[1], [0], [0], [1], [0, 0, 1, 1], [], []>} : vector<8x64xf32>, vector<64x256xf32>, vector<8x256xf32> -> vector<8x256xf32>
    %147 = arith.addf %146, %145 : vector<8x256xf32>
    %148 = vector.extract_strided_slice %147 {offsets = [0, 0], sizes = [8, 192], strides = [1, 1]} : vector<8x256xf32> to vector<8x192xf32>
    %149 = arith.negf %148 : vector<8x192xf32>
    %150 = math.exp %149 : vector<8x192xf32>
    %cst_37 = arith.constant 1.000000e+00 : f32
    %151 = vector.broadcast %cst_37 : f32 to vector<8x192xf32>
    %152 = arith.addf %151, %150 : vector<8x192xf32>
    %153 = arith.divf %151, %152 : vector<8x192xf32>
    %154 = vector.extract_strided_slice %147 {offsets = [0, 192], sizes = [8, 64], strides = [1, 1]} : vector<8x256xf32> to vector<8x64xf32>
    %155 = math.tanh %154 : vector<8x64xf32>
    %156 = vector.extract_strided_slice %153 {offsets = [0, 0], sizes = [8, 64], strides = [1, 1]} : vector<8x192xf32> to vector<8x64xf32>
    %157 = vector.extract_strided_slice %153 {offsets = [0, 64], sizes = [8, 64], strides = [1, 1]} : vector<8x192xf32> to vector<8x64xf32>
    %158 = vector.extract_strided_slice %153 {offsets = [0, 128], sizes = [8, 64], strides = [1, 1]} : vector<8x192xf32> to vector<8x64xf32>
    %159 = arith.mulf %157, %139 : vector<8x64xf32>
    %160 = arith.mulf %156, %155 : vector<8x64xf32>
    %161 = arith.addf %159, %160 : vector<8x64xf32>
    %162 = math.tanh %161 : vector<8x64xf32>
    %163 = arith.mulf %158, %162 : vector<8x64xf32>
    %c7_i32 = arith.constant 7 : i32
    %c8_i32_38 = arith.constant 8 : i32
    %164 = arith.muli %c7_i32, %c8_i32_38 : i32
    %165 = tpu.assume_multiple %164, 8 : i32
    %166 = arith.index_cast %165 : i32 to index
    %c0_39 = arith.constant 0 : index
    %167 = vector.load %arg8[%166, %c0_39] : memref<64x256xf32, #tpu.memory_space<vmem>>, vector<8x256xf32>
    %cst_40 = arith.constant dense<0.000000e+00> : vector<8x256xf32>
    %168 = tpu.matmul %163, %7, %cst_40 {dimension_numbers = #tpu.dot_dimension_numbers<[1], [0], [0], [1], [0, 0, 1, 1], [], []>} : vector<8x64xf32>, vector<64x256xf32>, vector<8x256xf32> -> vector<8x256xf32>
    %169 = arith.addf %168, %167 : vector<8x256xf32>
    %170 = vector.extract_strided_slice %169 {offsets = [0, 0], sizes = [8, 192], strides = [1, 1]} : vector<8x256xf32> to vector<8x192xf32>
    %171 = arith.negf %170 : vector<8x192xf32>
    %172 = math.exp %171 : vector<8x192xf32>
    %cst_41 = arith.constant 1.000000e+00 : f32
    %173 = vector.broadcast %cst_41 : f32 to vector<8x192xf32>
    %174 = arith.addf %173, %172 : vector<8x192xf32>
    %175 = arith.divf %173, %174 : vector<8x192xf32>
    %176 = vector.extract_strided_slice %169 {offsets = [0, 192], sizes = [8, 64], strides = [1, 1]} : vector<8x256xf32> to vector<8x64xf32>
    %177 = math.tanh %176 : vector<8x64xf32>
    %178 = vector.extract_strided_slice %175 {offsets = [0, 0], sizes = [8, 64], strides = [1, 1]} : vector<8x192xf32> to vector<8x64xf32>
    %179 = vector.extract_strided_slice %175 {offsets = [0, 64], sizes = [8, 64], strides = [1, 1]} : vector<8x192xf32> to vector<8x64xf32>
    %180 = vector.extract_strided_slice %175 {offsets = [0, 128], sizes = [8, 64], strides = [1, 1]} : vector<8x192xf32> to vector<8x64xf32>
    %181 = arith.mulf %179, %161 : vector<8x64xf32>
    %182 = arith.mulf %178, %177 : vector<8x64xf32>
    %183 = arith.addf %181, %182 : vector<8x64xf32>
    %184 = math.tanh %183 : vector<8x64xf32>
    %185 = arith.mulf %180, %184 : vector<8x64xf32>
    %c8_i32_42 = arith.constant 8 : i32
    %c0_43 = arith.constant 0 : index
    %c0_44 = arith.constant 0 : index
    %186 = vector.load %arg5[%c0_43, %c0_44] : memref<64x128xf32, #tpu.memory_space<vmem>>, vector<64x32xf32>
    %cst_45 = arith.constant dense<0.000000e+00> : vector<8x32xf32>
    %187 = tpu.matmul %185, %186, %cst_45 {dimension_numbers = #tpu.dot_dimension_numbers<[1], [0], [0], [1], [0, 0, 1, 1], [], []>} : vector<8x64xf32>, vector<64x32xf32>, vector<8x32xf32> -> vector<8x32xf32>
    %c0_46 = arith.constant 0 : index
    %c0_47 = arith.constant 0 : index
    %188 = vector.load %arg6[%c0_46, %c0_47] : memref<1x128xf32, #tpu.memory_space<vmem>>, vector<1x32xf32>
    %189 = vector.broadcast %188 : vector<1x32xf32> to vector<8x32xf32>
    %190 = arith.addf %187, %189 : vector<8x32xf32>
    %191 = math.tanh %190 : vector<8x32xf32>
    %c0_48 = arith.constant 0 : index
    %c32 = arith.constant 32 : index
    %192 = vector.load %arg5[%c0_48, %c32] : memref<64x128xf32, #tpu.memory_space<vmem>>, vector<32x12xf32>
    %cst_49 = arith.constant dense<0.000000e+00> : vector<8x12xf32>
    %193 = tpu.matmul %191, %192, %cst_49 {dimension_numbers = #tpu.dot_dimension_numbers<[1], [0], [0], [1], [0, 0, 1, 1], [], []>} : vector<8x32xf32>, vector<32x12xf32>, vector<8x12xf32> -> vector<8x12xf32>
    %c0_50 = arith.constant 0 : index
    %c32_51 = arith.constant 32 : index
    %194 = vector.load %arg6[%c0_50, %c32_51] : memref<1x128xf32, #tpu.memory_space<vmem>>, vector<1x12xf32>
    %195 = vector.broadcast %194 : vector<1x12xf32> to vector<8x12xf32>
    %196 = arith.addf %193, %195 : vector<8x12xf32>
    %197 = math.tanh %196 : vector<8x12xf32>
    %c0_52 = arith.constant 0 : index
    %c0_53 = arith.constant 0 : index
    %198 = vector.load %arg1[%c0_52, %c0_53] : memref<8x8xf32, #tpu.memory_space<vmem>>, vector<8x8xf32>
    %c0_54 = arith.constant 0 : index
    %c44 = arith.constant 44 : index
    %199 = vector.load %arg5[%c0_54, %c44] : memref<64x128xf32, #tpu.memory_space<vmem>>, vector<12x12xf32>
    %cst_55 = arith.constant dense<0.000000e+00> : vector<8x12xf32>
    %200 = tpu.matmul %197, %199, %cst_55 {dimension_numbers = #tpu.dot_dimension_numbers<[1], [0], [0], [1], [0, 0, 1, 1], [], []>} : vector<8x12xf32>, vector<12x12xf32>, vector<8x12xf32> -> vector<8x12xf32>
    %c0_56 = arith.constant 0 : index
    %c44_57 = arith.constant 44 : index
    %201 = vector.load %arg6[%c0_56, %c44_57] : memref<1x128xf32, #tpu.memory_space<vmem>>, vector<1x12xf32>
    %202 = vector.broadcast %201 : vector<1x12xf32> to vector<8x12xf32>
    %203 = arith.addf %200, %202 : vector<8x12xf32>
    %cst_58 = arith.constant dense<0.000000e+00> : vector<8x12xf32>
    %204 = tpu.matmul %198, %203, %cst_58 {dimension_numbers = #tpu.dot_dimension_numbers<[1], [0], [0], [1], [0, 0, 1, 1], [], []>} : vector<8x8xf32>, vector<8x12xf32>, vector<8x12xf32> -> vector<8x12xf32>
    %cst_59 = arith.constant 0.000000e+00 : f32
    %205 = vector.broadcast %cst_59 : f32 to vector<8x12xf32>
    %206 = arith.maximumf %204, %205 : vector<8x12xf32>
    %c0_60 = arith.constant 0 : index
    %c56 = arith.constant 56 : index
    %207 = vector.load %arg5[%c0_60, %c56] : memref<64x128xf32, #tpu.memory_space<vmem>>, vector<12x12xf32>
    %cst_61 = arith.constant dense<0.000000e+00> : vector<8x12xf32>
    %208 = tpu.matmul %206, %207, %cst_61 {dimension_numbers = #tpu.dot_dimension_numbers<[1], [0], [0], [1], [0, 0, 1, 1], [], []>} : vector<8x12xf32>, vector<12x12xf32>, vector<8x12xf32> -> vector<8x12xf32>
    %c0_62 = arith.constant 0 : index
    %c56_63 = arith.constant 56 : index
    %209 = vector.load %arg6[%c0_62, %c56_63] : memref<1x128xf32, #tpu.memory_space<vmem>>, vector<1x12xf32>
    %210 = vector.broadcast %209 : vector<1x12xf32> to vector<8x12xf32>
    %211 = arith.addf %208, %210 : vector<8x12xf32>
    %cst_64 = arith.constant dense<0.000000e+00> : vector<8x12xf32>
    %212 = tpu.matmul %198, %211, %cst_64 {dimension_numbers = #tpu.dot_dimension_numbers<[1], [0], [0], [1], [0, 0, 1, 1], [], []>} : vector<8x8xf32>, vector<8x12xf32>, vector<8x12xf32> -> vector<8x12xf32>
    %cst_65 = arith.constant dense<0xFF800000> : vector<8xf32>
    %213 = vector.multi_reduction <maximumf>, %212, %cst_65 [1] : vector<8x12xf32> to vector<8xf32>
    %214 = vector.shape_cast %213 : vector<8xf32> to vector<8x1xf32>
    %215 = vector.broadcast %214 : vector<8x1xf32> to vector<8x12xf32>
    %216 = arith.subf %212, %215 : vector<8x12xf32>
    %217 = math.exp %216 : vector<8x12xf32>
    %cst_66 = arith.constant dense<0.000000e+00> : vector<8xf32>
    %218 = vector.multi_reduction <add>, %217, %cst_66 [1] : vector<8x12xf32> to vector<8xf32>
    %219 = vector.shape_cast %218 : vector<8xf32> to vector<8x1xf32>
    %220 = math.log %219 : vector<8x1xf32>
    %221 = arith.addf %214, %220 : vector<8x1xf32>
    %222 = vector.broadcast %221 : vector<8x1xf32> to vector<8x12xf32>
    %223 = arith.subf %212, %222 : vector<8x12xf32>
    %c0_67 = arith.constant 0 : index
    %c68 = arith.constant 68 : index
    %224 = vector.load %arg5[%c0_67, %c68] : memref<64x128xf32, #tpu.memory_space<vmem>>, vector<12x1xf32>
    %cst_68 = arith.constant dense<0.000000e+00> : vector<8x1xf32>
    %225 = tpu.matmul %223, %224, %cst_68 {dimension_numbers = #tpu.dot_dimension_numbers<[1], [0], [0], [1], [0, 0, 1, 1], [], []>} : vector<8x12xf32>, vector<12x1xf32>, vector<8x1xf32> -> vector<8x1xf32>
    %c0_69 = arith.constant 0 : index
    %c68_70 = arith.constant 68 : index
    %226 = vector.load %arg6[%c0_69, %c68_70] : memref<1x128xf32, #tpu.memory_space<vmem>>, vector<1x1xf32>
    %227 = vector.broadcast %226 : vector<1x1xf32> to vector<8x1xf32>
    %228 = arith.addf %225, %227 : vector<8x1xf32>
    %229 = vector.broadcast %228 : vector<8x1xf32> to vector<8x12xf32>
    %230 = arith.addf %229, %197 : vector<8x12xf32>
    %c0_71 = arith.constant 0 : index
    %c0_72 = arith.constant 0 : index
    %231 = vector.load %arg7[%c0_71, %c0_72] : memref<8x12xf32, #tpu.memory_space<vmem>>, vector<8x12xf32>
    tpu.vector_store %arg7[%c0_71, %c0_72], %230 {strides = array<i32>} : memref<8x12xf32, #tpu.memory_space<vmem>>, vector<8x12xf32>,
    return
  }
}

</mosaic_0001>

<llo_original>
// kernel: tpu_custom_call.1
$region0: #{tpu_custom_call.1}
  #allocation0 [shape = 'u32[]', space=smem, size = 0x4, offset = 0x4, fixed_abs, tag = 'smem constant byte address 0x4 - core index']
  #allocation1 [shape = 'u32[144,128]{1,0:T(1,128)}', space=vmem, size = 0x12000, scoped, tag = 'internal scratch']
  #allocation2 [shape = 'f32[64,256]{1,0:T(8,128)}', space=vmem, size = 0x10000, scoped, tag = 'scratch operand']
  %s0 = inlined_call_operand.vmem [shape: f32[64,4], index: 0, kind: input, shape index: {}]
  %s1 = inlined_call_operand.vmem [shape: f32[8,8], index: 1, kind: input, shape index: {}]
  %s2 = inlined_call_operand.vmem [shape: f32[4,256], index: 2, kind: input, shape index: {}]
  %s3 = inlined_call_operand.hbm [shape: f32[64,256], index: 3, kind: input, shape index: {}]
  %s4 = inlined_call_operand.vmem [shape: f32[1,256], index: 4, kind: input, shape index: {}]
  %s5 = inlined_call_operand.vmem [shape: f32[64,128], index: 5, kind: input, shape index: {}]
  %s6 = inlined_call_operand.vmem [shape: f32[1,128], index: 6, kind: input, shape index: {}]
  %s7 = inlined_call_operand.hbm [shape: f32[8,12], index: 7, kind: output, shape index: {}]
  %s8 = sld [smem:[#allocation0]]
  $region42: #{tpu_custom_call.1} parent=0
    _
  %s10 = ssub.s32 1, %s8
  %s11 = scalar_select 0, %s10, %s8
  $region1: #{tpu_custom_call.1} parent=0
    #allocation3 [shape = 'u8[65536]{0}', space=vmem, size = 0x10000, scoped, tag = 'input window, operand 3, single buffered']
    #allocation4 [shape = 's32[1]{0}', space=sflag, size = 0x4, scoped, tag = 'scoped memory for tpu_custom_call.1']
    #allocation5 [shape = 's32[1]{0}', space=sflag, size = 0x4, scoped, tag = 'scoped memory for tpu_custom_call.1']
    #allocation6 [shape = 'u8[4096]{0}', space=vmem, size = 0x1000, scoped, tag = 'output window, operand 0, single buffered']
    %12 = vsyncpa [#allocation4], 0
    %13 = vsyncpa [#allocation5], 0
    // Predicated region
    $region2: #{tpu_custom_call.1} parent=1 // pred_check
      _
    $region3: #{tpu_custom_call.1} parent=1 // pred_check_branch
      %15 = sbr.rel (0) target = $region5
    $region4: #{tpu_custom_call.1} parent=1 // pred_region
      _
    $region5: #{tpu_custom_call.1} parent=1 // pred_fallthru
      _
    // Predicated region
    $region6: #{tpu_custom_call.1} parent=1 // pred_check
      _
    $region7: #{tpu_custom_call.1} parent=1 // pred_check_branch
      %17 = sbr.rel (0) target = $region9
    $region8: #{tpu_custom_call.1} parent=1 // pred_region
      _
    $region9: #{tpu_custom_call.1} parent=1 // pred_fallthru
      _
    // Predicated region
    $region10: #{tpu_custom_call.1} parent=1 // pred_check
      _
    $region11: #{tpu_custom_call.1} parent=1 // pred_check_branch
      %19 = sbr.rel (0) target = $region13
    $region12: #{tpu_custom_call.1} parent=1 // pred_region
      _
    $region13: #{tpu_custom_call.1} parent=1 // pred_fallthru
      _
    // Predicated region
    $region14: #{tpu_custom_call.1} parent=1 // pred_check
      _
    $region15: #{tpu_custom_call.1} parent=1 // pred_check_branch
      %21 = sbr.rel (0) target = $region17
    $region16: #{tpu_custom_call.1} parent=1 // pred_region
      %s23 = ssub.s32 2048, 2048
      %24 = vsyncadd [#allocation4], %s23
      %s25 = sshll.u32 [#allocation3], 4
      %s26 = int_to_ptr.vmem [resolvable:$true] %s25
      %31 = dma.hbm_to_vmem [thread:$0]  %s3, 2048, %s26, [#allocation4], 256, 256, 16
    $region17: #{tpu_custom_call.1} parent=1 // pred_fallthru
      _
    // Predicated region
    $region18: #{tpu_custom_call.1} parent=1 // pred_check
      _
    $region19: #{tpu_custom_call.1} parent=1 // pred_check_branch
      %33 = sbr.rel (0) target = $region21
    $region20: #{tpu_custom_call.1} parent=1 // pred_region
      _
    $region21: #{tpu_custom_call.1} parent=1 // pred_fallthru
      _
    // Predicated region
    $region22: #{tpu_custom_call.1} parent=1 // pred_check
      _
    $region23: #{tpu_custom_call.1} parent=1 // pred_check_branch
      %35 = sbr.rel (0) target = $region25
    $region24: #{tpu_custom_call.1} parent=1 // pred_region
      _
    $region25: #{tpu_custom_call.1} parent=1 // pred_fallthru
      _
    // Predicated region
    $region26: #{tpu_custom_call.1} parent=1 // pred_check
      _
    $region27: #{tpu_custom_call.1} parent=1 // pred_check_branch
      %37 = sbr.rel (0) target = $region29
    $region28: #{tpu_custom_call.1} parent=1 // pred_region
      _
    $region29: #{tpu_custom_call.1} parent=1 // pred_fallthru
      _
    // Predicated region
    $region30: #{tpu_custom_call.1} parent=1 // pred_check
      _
    $region31: #{tpu_custom_call.1} parent=1 // pred_check_branch
      %39 = sbr.rel (0) target = $region33
    $region32: #{tpu_custom_call.1} parent=1 // pred_region
      %40 = dma.done [#allocation4], 2048
    $region33: #{tpu_custom_call.1} parent=1 // pred_fallthru
      _
    %v41 = vld [vmem:[%s0] sm:$0xff]
    %v42 = vld [vmem:[%s0 + $0x8] sm:$0xff]
    %v43 = vld [vmem:[%s0 + $0x10] sm:$0xff]
    %v44 = vld [vmem:[%s0 + $0x18] sm:$0xff]
    %v45 = vld [vmem:[%s0 + $0x20] sm:$0xff]
    %v46 = vld [vmem:[%s0 + $0x28] sm:$0xff]
    %v47 = vld [vmem:[%s0 + $0x30] sm:$0xff]
    %v48 = vld [vmem:[%s0 + $0x38] sm:$0xff]
    %v49 = vld [vmem:[%s2] sm:$0xff]
    %v50 = vld [vmem:[%s4] sm:$0x3]
    %v52 = vlaneseq
    %v53 = vshrl.u32 %v52, 7
    %v54 = vsub.s32 0, %v53
    %v55 = vrot.slane %v50, %v54
    %v56 = vlaneseq
    %v57 = vshrl.u32 %v56, 7
    %v58 = vsub.s32 1, %v57
    %v59 = vrot.slane %v50, %v58
    %v63 = vcombine.high %v49, %v49
    %vm64 = vcmask 31744
    %v66 = vsel %vm64, %v41, 0
    %v69 = vsel %vm64, %v42, 0
    %v72 = vsel %vm64, %v43, 0
    %v75 = vsel %vm64, %v44, 0
    %v78 = vsel %vm64, %v45, 0
    %v81 = vsel %vm64, %v46, 0
    %v84 = vsel %vm64, %v47, 0
    %v87 = vsel %vm64, %v48, 0
    %vm89 = vcmask 1043456
    %v90 = vsel %vm89, %v49, 0
    %v92 = vsel %vm89, %v63, 0
    %94 = vmatprep.subr.mxu0 %v92
    %95 = vmatpush1.msra.mxu0 %v90
    %96 = vmatprep.subr.mxu0 0.0
    %97 = vmatpush1.msra.mxu0 0.0
    %98 = vmatprep.subr.mxu0 0.0
    %99 = vmatpush1.msra.mxu0 0.0
    %100 = vmatprep.subr.mxu0 0.0
    %101 = vmatpush1.msra.mxu0 0.0
    %102 = vmatprep.subr.mxu0 0.0
    %103 = vmatpush1.msra.mxu0 0.0
    %104 = vmatprep.subr.mxu0 0.0
    %105 = vmatpush1.msra.mxu0 0.0
    %106 = vmatprep.subr.mxu0 0.0
    %107 = vmatpush1.msra.mxu0 0.0
    %108 = vmatprep.subr.mxu0 0.0
    %109 = vmatpush1.msra.mxu0 0.0
    %110 = vmatprep.subr.mxu0 0.0
    %111 = vmatpush1.msra.mxu0 0.0
    %112 = vmatprep.subr.mxu0 0.0
    %113 = vmatpush1.msra.mxu0 0.0
    %114 = vmatprep.subr.mxu0 0.0
    %115 = vmatpush1.msra.mxu0 0.0
    %116 = vmatprep.subr.mxu0 0.0
    %117 = vmatpush1.msra.mxu0 0.0
    %118 = vmatprep.subr.mxu0 0.0
    %119 = vmatpush1.msra.mxu0 0.0
    %120 = vmatprep.subr.mxu0 0.0
    %121 = vmatpush1.msra.mxu0 0.0
    %122 = vmatprep.subr.mxu0 0.0
    %123 = vmatpush1.msra.mxu0 0.0
    %124 = vmatprep.subr.mxu0 0.0
    %125 = vmatpush1.msra.mxu0 0.0
    %126 = vmatprep.subr.mxu0 0.0
    %127 = vmatpush1.msra.mxu0 0.0
    %128 = vmatprep.subr.mxu0 0.0
    %129 = vmatpush1.msra.mxu0 0.0
    %130 = vmatprep.subr.mxu0 0.0
    %131 = vmatpush1.msra.mxu0 0.0
    %132 = vmatprep.subr.mxu0 0.0
    %133 = vmatpush1.msra.mxu0 0.0
    %134 = vmatprep.subr.mxu0 0.0
    %135 = vmatpush1.msra.mxu0 0.0
    %136 = vmatprep.subr.mxu0 0.0
    %137 = vmatpush1.msra.mxu0 0.0
    %138 = vmatprep.subr.mxu0 0.0
    %139 = vmatpush1.msra.mxu0 0.0
    %140 = vmatprep.subr.mxu0 0.0
    %141 = vmatpush1.msra.mxu0 0.0
    %142 = vmatprep.subr.mxu0 0.0
    %143 = vmatpush1.msra.mxu0 0.0
    %144 = vmatprep.subr.mxu0 0.0
    %145 = vmatpush1.msra.mxu0 0.0
    %146 = vmatprep.subr.mxu0 0.0
    %147 = vmatpush1.msra.mxu0 0.0
    %148 = vmatprep.subr.mxu0 0.0
    %149 = vmatpush1.msra.mxu0 0.0
    %150 = vmatprep.subr.mxu0 0.0
    %151 = vmatpush1.msra.mxu0 0.0
    %152 = vmatprep.subr.mxu0 0.0
    %153 = vmatpush1.msra.mxu0 0.0
    %154 = vmatprep.subr.mxu0 0.0
    %155 = vmatpush1.msra.mxu0 0.0
    %156 = vmatprep.subr.mxu0 0.0
    %157 = vmatpush1.msra.mxu0 0.0
    %158 = vmatprep.mubr.f32.mxu0 0.0
    %159 = vmatmul.mubr.f32.gmra.mrb[0].mxu0 %v66
    %v160 = vpop.f32.mrb[0].mxu0
    %v161 = vadd.f32 %v55, %v160
    %v162 = vpop.f32.mrb[0].mxu0
    %v163 = vadd.f32 %v59, %v162
    %164 = vmatprep.mubr.f32.mxu0 0.0
    %165 = vmatmul.mubr.f32.gmra.mrb[0].mxu0 %v69
    %v166 = vpop.f32.mrb[0].mxu0
    %v167 = vadd.f32 %v55, %v166
    %v168 = vpop.f32.mrb[0].mxu0
    %v169 = vadd.f32 %v59, %v168
    %170 = vmatprep.mubr.f32.mxu0 0.0
    %171 = vmatmul.mubr.f32.gmra.mrb[0].mxu0 %v72
    %v172 = vpop.f32.mrb[0].mxu0
    %v173 = vadd.f32 %v55, %v172
    %v174 = vpop.f32.mrb[0].mxu0
    %v175 = vadd.f32 %v59, %v174
    %176 = vmatprep.mubr.f32.mxu0 0.0
    %177 = vmatmul.mubr.f32.gmra.mrb[0].mxu0 %v75
    %v178 = vpop.f32.mrb[0].mxu0
    %v179 = vadd.f32 %v55, %v178
    %v180 = vpop.f32.mrb[0].mxu0
    %v181 = vadd.f32 %v59, %v180
    %182 = vmatprep.mubr.f32.mxu0 0.0
    %183 = vmatmul.mubr.f32.gmra.mrb[0].mxu0 %v78
    %v184 = vpop.f32.mrb[0].mxu0
    %v185 = vadd.f32 %v55, %v184
    %v186 = vpop.f32.mrb[0].mxu0
    %v187 = vadd.f32 %v59, %v186
    %188 = vmatprep.mubr.f32.mxu0 0.0
    %189 = vmatmul.mubr.f32.gmra.mrb[0].mxu0 %v81
    %v190 = vpop.f32.mrb[0].mxu0
    %v191 = vadd.f32 %v55, %v190
    %v192 = vpop.f32.mrb[0].mxu0
    %v193 = vadd.f32 %v59, %v192
    %194 = vmatprep.mubr.f32.mxu0 0.0
    %195 = vmatmul.mubr.f32.gmra.mrb[0].mxu0 %v84
    %v196 = vpop.f32.mrb[0].mxu0
    %v197 = vadd.f32 %v55, %v196
    %v198 = vpop.f32.mrb[0].mxu0
    %v199 = vadd.f32 %v59, %v198
    %200 = vmatprep.mubr.f32.mxu0 0.0
    %201 = vmatmul.mubr.f32.gmra.mrb[0].mxu0 %v87
    %v202 = vpop.f32.mrb[0].mxu0
    %v203 = vadd.f32 %v55, %v202
    %v204 = vpop.f32.mrb[0].mxu0
    %v205 = vadd.f32 %v59, %v204
    %206 = vdwg.mxu0
    %207 = vst [vmem:[#allocation2] sm:$0xff] %v161
    %208 = vst [vmem:[#allocation2 + $0x8] sm:$0xff] %v163
    %209 = vst [vmem:[#allocation2 + $0x10] sm:$0xff] %v167
    %210 = vst [vmem:[#allocation2 + $0x18] sm:$0xff] %v169
    %211 = vst [vmem:[#allocation2 + $0x20] sm:$0xff] %v173
    %212 = vst [vmem:[#allocation2 + $0x28] sm:$0xff] %v175
    %213 = vst [vmem:[#allocation2 + $0x30] sm:$0xff] %v179
    %214 = vst [vmem:[#allocation2 + $0x38] sm:$0xff] %v181
    %215 = vst [vmem:[#allocation2 + $0x40] sm:$0xff] %v185
    %216 = vst [vmem:[#allocation2 + $0x48] sm:$0xff] %v187
    %217 = vst [vmem:[#allocation2 + $0x50] sm:$0xff] %v191
    %218 = vst [vmem:[#allocation2 + $0x58] sm:$0xff] %v193
    %219 = vst [vmem:[#allocation2 + $0x60] sm:$0xff] %v197
    %220 = vst [vmem:[#allocation2 + $0x68] sm:$0xff] %v199
    %221 = vst [vmem:[#allocation2 + $0x70] sm:$0xff] %v203
    %222 = vst [vmem:[#allocation2 + $0x78] sm:$0xff] %v205
    %v223 = vld [vmem:[#allocation3] sm:$0xff]
    %v224 = vld [vmem:[#allocation3 + $0x8] sm:$0xff]
    %v225 = vld [vmem:[#allocation3 + $0x10] sm:$0xff]
    %v226 = vld [vmem:[#allocation3 + $0x18] sm:$0xff]
    %v227 = vld [vmem:[#allocation3 + $0x20] sm:$0xff]
    %v228 = vld [vmem:[#allocation3 + $0x28] sm:$0xff]
    %v229 = vld [vmem:[#allocation3 + $0x30] sm:$0xff]
    %v230 = vld [vmem:[#allocation3 + $0x38] sm:$0xff]
    %v231 = vld [vmem:[#allocation3 + $0x40] sm:$0xff]
    %v232 = vld [vmem:[#allocation3 + $0x48] sm:$0xff]
    %v233 = vld [vmem:[#allocation3 + $0x50] sm:$0xff]
    %v234 = vld [vmem:[#allocation3 + $0x58] sm:$0xff]
    %v235 = vld [vmem:[#allocation3 + $0x60] sm:$0xff]
    %v236 = vld [vmem:[#allocation3 + $0x68] sm:$0xff]
    %v237 = vld [vmem:[#allocation3 + $0x70] sm:$0xff]
    %v238 = vld [vmem:[#allocation3 + $0x78] sm:$0xff]
    %s239 = smul.u32 0, 2
    %s240 = smul.addr %s239, 8
    %s241 = scalar_lea.vmem [#allocation2], %s240
    %v242 = vld [vmem:[%s241] sm:$0xff]
    %v243 = vld [vmem:[%s241 + $0x8] sm:$0xff]
    %vm244 = vcmask 523264
    %v246 = vsel %vm244, 0.0, 0
    %248 = vmatprep.subr.mxu0 %v224
    %249 = vmatpush1.msra.mxu0 %v223
    %250 = vmatprep.subr.mxu0 %v226
    %251 = vmatpush1.msra.mxu0 %v225
    %252 = vmatprep.subr.mxu0 %v228
    %253 = vmatpush1.msra.mxu0 %v227
    %254 = vmatprep.subr.mxu0 %v230
    %255 = vmatpush1.msra.mxu0 %v229
    %256 = vmatprep.subr.mxu0 %v232
    %257 = vmatpush1.msra.mxu0 %v231
    %258 = vmatprep.subr.mxu0 %v234
    %259 = vmatpush1.msra.mxu0 %v233
    %260 = vmatprep.subr.mxu0 %v236
    %261 = vmatpush1.msra.mxu0 %v235
    %262 = vmatprep.subr.mxu0 %v238
    %263 = vmatpush1.msra.mxu0 %v237
    %264 = vmatprep.subr.mxu0 0.0
    %265 = vmatpush1.msra.mxu0 0.0
    %266 = vmatprep.subr.mxu0 0.0
    %267 = vmatpush1.msra.mxu0 0.0
    %268 = vmatprep.subr.mxu0 0.0
    %269 = vmatpush1.msra.mxu0 0.0
    %270 = vmatprep.subr.mxu0 0.0
    %271 = vmatpush1.msra.mxu0 0.0
    %272 = vmatprep.subr.mxu0 0.0
    %273 = vmatpush1.msra.mxu0 0.0
    %274 = vmatprep.subr.mxu0 0.0
    %275 = vmatpush1.msra.mxu0 0.0
    %276 = vmatprep.subr.mxu0 0.0
    %277 = vmatpush1.msra.mxu0 0.0
    %278 = vmatprep.subr.mxu0 0.0
    %279 = vmatpush1.msra.mxu0 0.0
    %280 = vmatprep.subr.mxu0 0.0
    %281 = vmatpush1.msra.mxu0 0.0
    %282 = vmatprep.subr.mxu0 0.0
    %283 = vmatpush1.msra.mxu0 0.0
    %284 = vmatprep.subr.mxu0 0.0
    %285 = vmatpush1.msra.mxu0 0.0
    %286 = vmatprep.subr.mxu0 0.0
    %287 = vmatpush1.msra.mxu0 0.0
    %288 = vmatprep.subr.mxu0 0.0
    %289 = vmatpush1.msra.mxu0 0.0
    %290 = vmatprep.subr.mxu0 0.0
    %291 = vmatpush1.msra.mxu0 0.0
    %292 = vmatprep.subr.mxu0 0.0
    %293 = vmatpush1.msra.mxu0 0.0
    %294 = vmatprep.subr.mxu0 0.0
    %295 = vmatpush1.msra.mxu0 0.0
    %296 = vmatprep.subr.mxu0 0.0
    %297 = vmatpush1.msra.mxu0 0.0
    %298 = vmatprep.subr.mxu0 0.0
    %299 = vmatpush1.msra.mxu0 0.0
    %300 = vmatprep.subr.mxu0 0.0
    %301 = vmatpush1.msra.mxu0 0.0
    %302 = vmatprep.subr.mxu0 0.0
    %303 = vmatpush1.msra.mxu0 0.0
    %304 = vmatprep.subr.mxu0 0.0
    %305 = vmatpush1.msra.mxu0 0.0
    %306 = vmatprep.subr.mxu0 0.0
    %307 = vmatpush1.msra.mxu0 0.0
    %308 = vmatprep.subr.mxu0 0.0
    %309 = vmatpush1.msra.mxu0 0.0
    %310 = vmatprep.subr.mxu0 0.0
    %311 = vmatpush1.msra.mxu0 0.0
    %312 = vmatprep.mubr.f32.mxu0 0.0
    %313 = vmatmul.mubr.f32.gmra.mrb[0].mxu0 %v246
    %v314 = vpop.f32.mrb[0].mxu0
    %v315 = vadd.f32 %v242, %v314
    %v316 = vpop.f32.mrb[0].mxu0
    %v317 = vadd.f32 %v243, %v316
    %318 = vdwg.mxu0
    %v319 = vxor.u32 %v315, 2147483648
    %v320 = vxor.u32 %v317, 2147483648
    %v321 = vmul.f32 %v319, 1.442695
    %v322 = vpow.pop %v321
    %v323 = vmul.f32 %v320, 1.442695
    %v324 = vpow.pop %v323
    %v325 = vadd.f32 %v322, 1.0
    %v326 = vadd.f32 %v324, 1.0
    %v327 = vrcp.pop %v325
    %v328 = vmul.f32 1.0, %v327
    %v329 = vrcp.pop %v326
    %v330 = vmul.f32 1.0, %v329
    %v331 = vtanh.pop %v317
    %v332 = vmul.f32 %v328, 0.0
    %334 = vrot.lane.b32.xlu0 %v331, 64
    %v335 = vpop.permute.xlu0 %334
    %v337 = vmul.f32 %v328, %v335
    %339 = vrot.lane.b32.xlu0 %v337, 64
    %v340 = vpop.permute.xlu0 %339
    %v342 = vadd.f32 %v332, %v340
    %v343 = vtanh.pop %v342
    %345 = vrot.lane.b32.xlu0 %v343, 64
    %v346 = vpop.permute.xlu0 %345
    %v348 = vmul.f32 %v330, %v346
    %s349 = smul.u32 1, 2
    %s350 = smul.addr %s349, 8
    %s351 = scalar_lea.vmem [#allocation2], %s350
    %v352 = vld [vmem:[%s351] sm:$0xff]
    %v353 = vld [vmem:[%s351 + $0x8] sm:$0xff]
    %v355 = vsel %vm244, %v348, 0
    %357 = vmatprep.subr.mxu0 %v224
    %358 = vmatpush1.msra.mxu0 %v223
    %359 = vmatprep.subr.mxu0 %v226
    %360 = vmatpush1.msra.mxu0 %v225
    %361 = vmatprep.subr.mxu0 %v228
    %362 = vmatpush1.msra.mxu0 %v227
    %363 = vmatprep.subr.mxu0 %v230
    %364 = vmatpush1.msra.mxu0 %v229
    %365 = vmatprep.subr.mxu0 %v232
    %366 = vmatpush1.msra.mxu0 %v231
    %367 = vmatprep.subr.mxu0 %v234
    %368 = vmatpush1.msra.mxu0 %v233
    %369 = vmatprep.subr.mxu0 %v236
    %370 = vmatpush1.msra.mxu0 %v235
    %371 = vmatprep.subr.mxu0 %v238
    %372 = vmatpush1.msra.mxu0 %v237
    %373 = vmatprep.subr.mxu0 0.0
    %374 = vmatpush1.msra.mxu0 0.0
    %375 = vmatprep.subr.mxu0 0.0
    %376 = vmatpush1.msra.mxu0 0.0
    %377 = vmatprep.subr.mxu0 0.0
    %378 = vmatpush1.msra.mxu0 0.0
    %379 = vmatprep.subr.mxu0 0.0
    %380 = vmatpush1.msra.mxu0 0.0
    %381 = vmatprep.subr.mxu0 0.0
    %382 = vmatpush1.msra.mxu0 0.0
    %383 = vmatprep.subr.mxu0 0.0
    %384 = vmatpush1.msra.mxu0 0.0
    %385 = vmatprep.subr.mxu0 0.0
    %386 = vmatpush1.msra.mxu0 0.0
    %387 = vmatprep.subr.mxu0 0.0
    %388 = vmatpush1.msra.mxu0 0.0
    %389 = vmatprep.subr.mxu0 0.0
    %390 = vmatpush1.msra.mxu0 0.0
    %391 = vmatprep.subr.mxu0 0.0
    %392 = vmatpush1.msra.mxu0 0.0
    %393 = vmatprep.subr.mxu0 0.0
    %394 = vmatpush1.msra.mxu0 0.0
    %395 = vmatprep.subr.mxu0 0.0
    %396 = vmatpush1.msra.mxu0 0.0
    %397 = vmatprep.subr.mxu0 0.0
    %398 = vmatpush1.msra.mxu0 0.0
    %399 = vmatprep.subr.mxu0 0.0
    %400 = vmatpush1.msra.mxu0 0.0
    %401 = vmatprep.subr.mxu0 0.0
    %402 = vmatpush1.msra.mxu0 0.0
    %403 = vmatprep.subr.mxu0 0.0
    %404 = vmatpush1.msra.mxu0 0.0
    %405 = vmatprep.subr.mxu0 0.0
    %406 = vmatpush1.msra.mxu0 0.0
    %407 = vmatprep.subr.mxu0 0.0
    %408 = vmatpush1.msra.mxu0 0.0
    %409 = vmatprep.subr.mxu0 0.0
    %410 = vmatpush1.msra.mxu0 0.0
    %411 = vmatprep.subr.mxu0 0.0
    %412 = vmatpush1.msra.mxu0 0.0
    %413 = vmatprep.subr.mxu0 0.0
    %414 = vmatpush1.msra.mxu0 0.0
    %415 = vmatprep.subr.mxu0 0.0
    %416 = vmatpush1.msra.mxu0 0.0
    %417 = vmatprep.subr.mxu0 0.0
    %418 = vmatpush1.msra.mxu0 0.0
    %419 = vmatprep.subr.mxu0 0.0
    %420 = vmatpush1.msra.mxu0 0.0
    %421 = vmatprep.mubr.f32.mxu0 0.0
    %422 = vmatmul.mubr.f32.gmra.mrb[0].mxu0 %v355
    %v423 = vpop.f32.mrb[0].mxu0
    %v424 = vadd.f32 %v352, %v423
    %v425 = vpop.f32.mrb[0].mxu0
    %v426 = vadd.f32 %v353, %v425
    %427 = vdwg.mxu0
    %v428 = vxor.u32 %v424, 2147483648
    %v429 = vxor.u32 %v426, 2147483648
    %v430 = vmul.f32 %v428, 1.442695
    %v431 = vpow.pop %v430
    %v432 = vmul.f32 %v429, 1.442695
    %v433 = vpow.pop %v432
    %v434 = vadd.f32 %v431, 1.0
    %v435 = vadd.f32 %v433, 1.0
    %v436 = vrcp.pop %v434
    %v437 = vmul.f32 1.0, %v436
    %v438 = vrcp.pop %v435
    %v439 = vmul.f32 1.0, %v438
    %v440 = vtanh.pop %v426
    %v441 = vmul.f32 %v437, %v342
    %443 = vrot.lane.b32.xlu0 %v440, 64
    %v444 = vpop.permute.xlu0 %443
    %v446 = vmul.f32 %v437, %v444
    %448 = vrot.lane.b32.xlu0 %v446, 64
    %v449 = vpop.permute.xlu0 %448
    %v451 = vadd.f32 %v441, %v449
    %v452 = vtanh.pop %v451
    %454 = vrot.lane.b32.xlu0 %v452, 64
    %v455 = vpop.permute.xlu0 %454
    %v457 = vmul.f32 %v439, %v455
    %s458 = smul.u32 2, 2
    %s459 = smul.addr %s458, 8
    %s460 = scalar_lea.vmem [#allocation2], %s459
    %v461 = vld [vmem:[%s460] sm:$0xff]
    %v462 = vld [vmem:[%s460 + $0x8] sm:$0xff]
    %v464 = vsel %vm244, %v457, 0
    %466 = vmatprep.subr.mxu0 %v224
    %467 = vmatpush1.msra.mxu0 %v223
    %468 = vmatprep.subr.mxu0 %v226
    %469 = vmatpush1.msra.mxu0 %v225
    %470 = vmatprep.subr.mxu0 %v228
    %471 = vmatpush1.msra.mxu0 %v227
    %472 = vmatprep.subr.mxu0 %v230
    %473 = vmatpush1.msra.mxu0 %v229
    %474 = vmatprep.subr.mxu0 %v232
    %475 = vmatpush1.msra.mxu0 %v231
    %476 = vmatprep.subr.mxu0 %v234
    %477 = vmatpush1.msra.mxu0 %v233
    %478 = vmatprep.subr.mxu0 %v236
    %479 = vmatpush1.msra.mxu0 %v235
    %480 = vmatprep.subr.mxu0 %v238
    %481 = vmatpush1.msra.mxu0 %v237
    %482 = vmatprep.subr.mxu0 0.0
    %483 = vmatpush1.msra.mxu0 0.0
    %484 = vmatprep.subr.mxu0 0.0
    %485 = vmatpush1.msra.mxu0 0.0
    %486 = vmatprep.subr.mxu0 0.0
    %487 = vmatpush1.msra.mxu0 0.0
    %488 = vmatprep.subr.mxu0 0.0
    %489 = vmatpush1.msra.mxu0 0.0
    %490 = vmatprep.subr.mxu0 0.0
    %491 = vmatpush1.msra.mxu0 0.0
    %492 = vmatprep.subr.mxu0 0.0
    %493 = vmatpush1.msra.mxu0 0.0
    %494 = vmatprep.subr.mxu0 0.0
    %495 = vmatpush1.msra.mxu0 0.0
    %496 = vmatprep.subr.mxu0 0.0
    %497 = vmatpush1.msra.mxu0 0.0
    %498 = vmatprep.subr.mxu0 0.0
    %499 = vmatpush1.msra.mxu0 0.0
    %500 = vmatprep.subr.mxu0 0.0
    %501 = vmatpush1.msra.mxu0 0.0
    %502 = vmatprep.subr.mxu0 0.0
    %503 = vmatpush1.msra.mxu0 0.0
    %504 = vmatprep.subr.mxu0 0.0
    %505 = vmatpush1.msra.mxu0 0.0
    %506 = vmatprep.subr.mxu0 0.0
    %507 = vmatpush1.msra.mxu0 0.0
    %508 = vmatprep.subr.mxu0 0.0
    %509 = vmatpush1.msra.mxu0 0.0
    %510 = vmatprep.subr.mxu0 0.0
    %511 = vmatpush1.msra.mxu0 0.0
    %512 = vmatprep.subr.mxu0 0.0
    %513 = vmatpush1.msra.mxu0 0.0
    %514 = vmatprep.subr.mxu0 0.0
    %515 = vmatpush1.msra.mxu0 0.0
    %516 = vmatprep.subr.mxu0 0.0
    %517 = vmatpush1.msra.mxu0 0.0
    %518 = vmatprep.subr.mxu0 0.0
    %519 = vmatpush1.msra.mxu0 0.0
    %520 = vmatprep.subr.mxu0 0.0
    %521 = vmatpush1.msra.mxu0 0.0
    %522 = vmatprep.subr.mxu0 0.0
    %523 = vmatpush1.msra.mxu0 0.0
    %524 = vmatprep.subr.mxu0 0.0
    %525 = vmatpush1.msra.mxu0 0.0
    %526 = vmatprep.subr.mxu0 0.0
    %527 = vmatpush1.msra.mxu0 0.0
    %528 = vmatprep.subr.mxu0 0.0
    %529 = vmatpush1.msra.mxu0 0.0
    %530 = vmatprep.mubr.f32.mxu0 0.0
    %531 = vmatmul.mubr.f32.gmra.mrb[0].mxu0 %v464
    %v532 = vpop.f32.mrb[0].mxu0
    %v533 = vadd.f32 %v461, %v532
    %v534 = vpop.f32.mrb[0].mxu0
    %v535 = vadd.f32 %v462, %v534
    %536 = vdwg.mxu0
    %v537 = vxor.u32 %v533, 2147483648
    %v538 = vxor.u32 %v535, 2147483648
    %v539 = vmul.f32 %v537, 1.442695
    %v540 = vpow.pop %v539
    %v541 = vmul.f32 %v538, 1.442695
    %v542 = vpow.pop %v541
    %v543 = vadd.f32 %v540, 1.0
    %v544 = vadd.f32 %v542, 1.0
    %v545 = vrcp.pop %v543
    %v546 = vmul.f32 1.0, %v545
    %v547 = vrcp.pop %v544
    %v548 = vmul.f32 1.0, %v547
    %v549 = vtanh.pop %v535
    %v550 = vmul.f32 %v546, %v451
    %552 = vrot.lane.b32.xlu0 %v549, 64
    %v553 = vpop.permute.xlu0 %552
    %v555 = vmul.f32 %v546, %v553
    %557 = vrot.lane.b32.xlu0 %v555, 64
    %v558 = vpop.permute.xlu0 %557
    %v560 = vadd.f32 %v550, %v558
    %v561 = vtanh.pop %v560
    %563 = vrot.lane.b32.xlu0 %v561, 64
    %v564 = vpop.permute.xlu0 %563
    %v566 = vmul.f32 %v548, %v564
    %s567 = smul.u32 3, 2
    %s568 = smul.addr %s567, 8
    %s569 = scalar_lea.vmem [#allocation2], %s568
    %v570 = vld [vmem:[%s569] sm:$0xff]
    %v571 = vld [vmem:[%s569 + $0x8] sm:$0xff]
    %v573 = vsel %vm244, %v566, 0
    %575 = vmatprep.subr.mxu0 %v224
    %576 = vmatpush1.msra.mxu0 %v223
    %577 = vmatprep.subr.mxu0 %v226
    %578 = vmatpush1.msra.mxu0 %v225
    %579 = vmatprep.subr.mxu0 %v228
    %580 = vmatpush1.msra.mxu0 %v227
    %581 = vmatprep.subr.mxu0 %v230
    %582 = vmatpush1.msra.mxu0 %v229
    %583 = vmatprep.subr.mxu0 %v232
    %584 = vmatpush1.msra.mxu0 %v231
    %585 = vmatprep.subr.mxu0 %v234
    %586 = vmatpush1.msra.mxu0 %v233
    %587 = vmatprep.subr.mxu0 %v236
    %588 = vmatpush1.msra.mxu0 %v235
    %589 = vmatprep.subr.mxu0 %v238
    %590 = vmatpush1.msra.mxu0 %v237
    %591 = vmatprep.subr.mxu0 0.0
    %592 = vmatpush1.msra.mxu0 0.0
    %593 = vmatprep.subr.mxu0 0.0
    %594 = vmatpush1.msra.mxu0 0.0
    %595 = vmatprep.subr.mxu0 0.0
    %596 = vmatpush1.msra.mxu0 0.0
    %597 = vmatprep.subr.mxu0 0.0
    %598 = vmatpush1.msra.mxu0 0.0
    %599 = vmatprep.subr.mxu0 0.0
    %600 = vmatpush1.msra.mxu0 0.0
    %601 = vmatprep.subr.mxu0 0.0
    %602 = vmatpush1.msra.mxu0 0.0
    %603 = vmatprep.subr.mxu0 0.0
    %604 = vmatpush1.msra.mxu0 0.0
    %605 = vmatprep.subr.mxu0 0.0
    %606 = vmatpush1.msra.mxu0 0.0
    %607 = vmatprep.subr.mxu0 0.0
    %608 = vmatpush1.msra.mxu0 0.0
    %609 = vmatprep.subr.mxu0 0.0
    %610 = vmatpush1.msra.mxu0 0.0
    %611 = vmatprep.subr.mxu0 0.0
    %612 = vmatpush1.msra.mxu0 0.0
    %613 = vmatprep.subr.mxu0 0.0
    %614 = vmatpush1.msra.mxu0 0.0
    %615 = vmatprep.subr.mxu0 0.0
    %616 = vmatpush1.msra.mxu0 0.0
    %617 = vmatprep.subr.mxu0 0.0
    %618 = vmatpush1.msra.mxu0 0.0
    %619 = vmatprep.subr.mxu0 0.0
    %620 = vmatpush1.msra.mxu0 0.0
    %621 = vmatprep.subr.mxu0 0.0
    %622 = vmatpush1.msra.mxu0 0.0
    %623 = vmatprep.subr.mxu0 0.0
    %624 = vmatpush1.msra.mxu0 0.0
    %625 = vmatprep.subr.mxu0 0.0
    %626 = vmatpush1.msra.mxu0 0.0
    %627 = vmatprep.subr.mxu0 0.0
    %628 = vmatpush1.msra.mxu0 0.0
    %629 = vmatprep.subr.mxu0 0.0
    %630 = vmatpush1.msra.mxu0 0.0
    %631 = vmatprep.subr.mxu0 0.0
    %632 = vmatpush1.msra.mxu0 0.0
    %633 = vmatprep.subr.mxu0 0.0
    %634 = vmatpush1.msra.mxu0 0.0
    %635 = vmatprep.subr.mxu0 0.0
    %636 = vmatpush1.msra.mxu0 0.0
    %637 = vmatprep.subr.mxu0 0.0
    %638 = vmatpush1.msra.mxu0 0.0
    %639 = vmatprep.mubr.f32.mxu0 0.0
    %640 = vmatmul.mubr.f32.gmra.mrb[0].mxu0 %v573
    %v641 = vpop.f32.mrb[0].mxu0
    %v642 = vadd.f32 %v570, %v641
    %v643 = vpop.f32.mrb[0].mxu0
    %v644 = vadd.f32 %v571, %v643
    %645 = vdwg.mxu0
    %v646 = vxor.u32 %v642, 2147483648
    %v647 = vxor.u32 %v644, 2147483648
    %v648 = vmul.f32 %v646, 1.442695
    %v649 = vpow.pop %v648
    %v650 = vmul.f32 %v647, 1.442695
    %v651 = vpow.pop %v650
    %v652 = vadd.f32 %v649, 1.0
    %v653 = vadd.f32 %v651, 1.0
    %v654 = vrcp.pop %v652
    %v655 = vmul.f32 1.0, %v654
    %v656 = vrcp.pop %v653
    %v657 = vmul.f32 1.0, %v656
    %v658 = vtanh.pop %v644
    %v659 = vmul.f32 %v655, %v560
    %661 = vrot.lane.b32.xlu0 %v658, 64
    %v662 = vpop.permute.xlu0 %661
    %v664 = vmul.f32 %v655, %v662
    %666 = vrot.lane.b32.xlu0 %v664, 64
    %v667 = vpop.permute.xlu0 %666
    %v669 = vadd.f32 %v659, %v667
    %v670 = vtanh.pop %v669
    %672 = vrot.lane.b32.xlu0 %v670, 64
    %v673 = vpop.permute.xlu0 %672
    %v675 = vmul.f32 %v657, %v673
    %s676 = smul.u32 4, 2
    %s677 = smul.addr %s676, 8
    %s678 = scalar_lea.vmem [#allocation2], %s677
    %v679 = vld [vmem:[%s678] sm:$0xff]
    %v680 = vld [vmem:[%s678 + $0x8] sm:$0xff]
    %v682 = vsel %vm244, %v675, 0
    %684 = vmatprep.subr.mxu0 %v224
    %685 = vmatpush1.msra.mxu0 %v223
    %686 = vmatprep.subr.mxu0 %v226
    %687 = vmatpush1.msra.mxu0 %v225
    %688 = vmatprep.subr.mxu0 %v228
    %689 = vmatpush1.msra.mxu0 %v227
    %690 = vmatprep.subr.mxu0 %v230
    %691 = vmatpush1.msra.mxu0 %v229
    %692 = vmatprep.subr.mxu0 %v232
    %693 = vmatpush1.msra.mxu0 %v231
    %694 = vmatprep.subr.mxu0 %v234
    %695 = vmatpush1.msra.mxu0 %v233
    %696 = vmatprep.subr.mxu0 %v236
    %697 = vmatpush1.msra.mxu0 %v235
    %698 = vmatprep.subr.mxu0 %v238
    %699 = vmatpush1.msra.mxu0 %v237
    %700 = vmatprep.subr.mxu0 0.0
    %701 = vmatpush1.msra.mxu0 0.0
    %702 = vmatprep.subr.mxu0 0.0
    %703 = vmatpush1.msra.mxu0 0.0
    %704 = vmatprep.subr.mxu0 0.0
    %705 = vmatpush1.msra.mxu0 0.0
    %706 = vmatprep.subr.mxu0 0.0
    %707 = vmatpush1.msra.mxu0 0.0
    %708 = vmatprep.subr.mxu0 0.0
    %709 = vmatpush1.msra.mxu0 0.0
    %710 = vmatprep.subr.mxu0 0.0
    %711 = vmatpush1.msra.mxu0 0.0
    %712 = vmatprep.subr.mxu0 0.0
    %713 = vmatpush1.msra.mxu0 0.0
    %714 = vmatprep.subr.mxu0 0.0
    %715 = vmatpush1.msra.mxu0 0.0
    %716 = vmatprep.subr.mxu0 0.0
    %717 = vmatpush1.msra.mxu0 0.0
    %718 = vmatprep.subr.mxu0 0.0
    %719 = vmatpush1.msra.mxu0 0.0
    %720 = vmatprep.subr.mxu0 0.0
    %721 = vmatpush1.msra.mxu0 0.0
    %722 = vmatprep.subr.mxu0 0.0
    %723 = vmatpush1.msra.mxu0 0.0
    %724 = vmatprep.subr.mxu0 0.0
    %725 = vmatpush1.msra.mxu0 0.0
    %726 = vmatprep.subr.mxu0 0.0
    %727 = vmatpush1.msra.mxu0 0.0
    %728 = vmatprep.subr.mxu0 0.0
    %729 = vmatpush1.msra.mxu0 0.0
    %730 = vmatprep.subr.mxu0 0.0
    %731 = vmatpush1.msra.mxu0 0.0
    %732 = vmatprep.subr.mxu0 0.0
    %733 = vmatpush1.msra.mxu0 0.0
    %734 = vmatprep.subr.mxu0 0.0
    %735 = vmatpush1.msra.mxu0 0.0
    %736 = vmatprep.subr.mxu0 0.0
    %737 = vmatpush1.msra.mxu0 0.0
    %738 = vmatprep.subr.mxu0 0.0
    %739 = vmatpush1.msra.mxu0 0.0
    %740 = vmatprep.subr.mxu0 0.0
    %741 = vmatpush1.msra.mxu0 0.0
    %742 = vmatprep.subr.mxu0 0.0
    %743 = vmatpush1.msra.mxu0 0.0
    %744 = vmatprep.subr.mxu0 0.0
    %745 = vmatpush1.msra.mxu0 0.0
    %746 = vmatprep.subr.mxu0 0.0
    %747 = vmatpush1.msra.mxu0 0.0
    %748 = vmatprep.mubr.f32.mxu0 0.0
    %749 = vmatmul.mubr.f32.gmra.mrb[0].mxu0 %v682
    %v750 = vpop.f32.mrb[0].mxu0
    %v751 = vadd.f32 %v679, %v750
    %v752 = vpop.f32.mrb[0].mxu0
    %v753 = vadd.f32 %v680, %v752
    %754 = vdwg.mxu0
    %v755 = vxor.u32 %v751, 2147483648
    %v756 = vxor.u32 %v753, 2147483648
    %v757 = vmul.f32 %v755, 1.442695
    %v758 = vpow.pop %v757
    %v759 = vmul.f32 %v756, 1.442695
    %v760 = vpow.pop %v759
    %v761 = vadd.f32 %v758, 1.0
    %v762 = vadd.f32 %v760, 1.0
    %v763 = vrcp.pop %v761
    %v764 = vmul.f32 1.0, %v763
    %v765 = vrcp.pop %v762
    %v766 = vmul.f32 1.0, %v765
    %v767 = vtanh.pop %v753
    %v768 = vmul.f32 %v764, %v669
    %770 = vrot.lane.b32.xlu0 %v767, 64
    %v771 = vpop.permute.xlu0 %770
    %v773 = vmul.f32 %v764, %v771
    %775 = vrot.lane.b32.xlu0 %v773, 64
    %v776 = vpop.permute.xlu0 %775
    %v778 = vadd.f32 %v768, %v776
    %v779 = vtanh.pop %v778
    %781 = vrot.lane.b32.xlu0 %v779, 64
    %v782 = vpop.permute.xlu0 %781
    %v784 = vmul.f32 %v766, %v782
    %s785 = smul.u32 5, 2
    %s786 = smul.addr %s785, 8
    %s787 = scalar_lea.vmem [#allocation2], %s786
    %v788 = vld [vmem:[%s787] sm:$0xff]
    %v789 = vld [vmem:[%s787 + $0x8] sm:$0xff]
    %v791 = vsel %vm244, %v784, 0
    %793 = vmatprep.subr.mxu0 %v224
    %794 = vmatpush1.msra.mxu0 %v223
    %795 = vmatprep.subr.mxu0 %v226
    %796 = vmatpush1.msra.mxu0 %v225
    %797 = vmatprep.subr.mxu0 %v228
    %798 = vmatpush1.msra.mxu0 %v227
    %799 = vmatprep.subr.mxu0 %v230
    %800 = vmatpush1.msra.mxu0 %v229
    %801 = vmatprep.subr.mxu0 %v232
    %802 = vmatpush1.msra.mxu0 %v231
    %803 = vmatprep.subr.mxu0 %v234
    %804 = vmatpush1.msra.mxu0 %v233
    %805 = vmatprep.subr.mxu0 %v236
    %806 = vmatpush1.msra.mxu0 %v235
    %807 = vmatprep.subr.mxu0 %v238
    %808 = vmatpush1.msra.mxu0 %v237
    %809 = vmatprep.subr.mxu0 0.0
    %810 = vmatpush1.msra.mxu0 0.0
    %811 = vmatprep.subr.mxu0 0.0
    %812 = vmatpush1.msra.mxu0 0.0
    %813 = vmatprep.subr.mxu0 0.0
    %814 = vmatpush1.msra.mxu0 0.0
    %815 = vmatprep.subr.mxu0 0.0
    %816 = vmatpush1.msra.mxu0 0.0
    %817 = vmatprep.subr.mxu0 0.0
    %818 = vmatpush1.msra.mxu0 0.0
    %819 = vmatprep.subr.mxu0 0.0
    %820 = vmatpush1.msra.mxu0 0.0
    %821 = vmatprep.subr.mxu0 0.0
    %822 = vmatpush1.msra.mxu0 0.0
    %823 = vmatprep.subr.mxu0 0.0
    %824 = vmatpush1.msra.mxu0 0.0
    %825 = vmatprep.subr.mxu0 0.0
    %826 = vmatpush1.msra.mxu0 0.0
    %827 = vmatprep.subr.mxu0 0.0
    %828 = vmatpush1.msra.mxu0 0.0
    %829 = vmatprep.subr.mxu0 0.0
    %830 = vmatpush1.msra.mxu0 0.0
    %831 = vmatprep.subr.mxu0 0.0
    %832 = vmatpush1.msra.mxu0 0.0
    %833 = vmatprep.subr.mxu0 0.0
    %834 = vmatpush1.msra.mxu0 0.0
    %835 = vmatprep.subr.mxu0 0.0
    %836 = vmatpush1.msra.mxu0 0.0
    %837 = vmatprep.subr.mxu0 0.0
    %838 = vmatpush1.msra.mxu0 0.0
    %839 = vmatprep.subr.mxu0 0.0
    %840 = vmatpush1.msra.mxu0 0.0
    %841 = vmatprep.subr.mxu0 0.0
    %842 = vmatpush1.msra.mxu0 0.0
    %843 = vmatprep.subr.mxu0 0.0
    %844 = vmatpush1.msra.mxu0 0.0
    %845 = vmatprep.subr.mxu0 0.0
    %846 = vmatpush1.msra.mxu0 0.0
    %847 = vmatprep.subr.mxu0 0.0
    %848 = vmatpush1.msra.mxu0 0.0
    %849 = vmatprep.subr.mxu0 0.0
    %850 = vmatpush1.msra.mxu0 0.0
    %851 = vmatprep.subr.mxu0 0.0
    %852 = vmatpush1.msra.mxu0 0.0
    %853 = vmatprep.subr.mxu0 0.0
    %854 = vmatpush1.msra.mxu0 0.0
    %855 = vmatprep.subr.mxu0 0.0
    %856 = vmatpush1.msra.mxu0 0.0
    %857 = vmatprep.mubr.f32.mxu0 0.0
    %858 = vmatmul.mubr.f32.gmra.mrb[0].mxu0 %v791
    %v859 = vpop.f32.mrb[0].mxu0
    %v860 = vadd.f32 %v788, %v859
    %v861 = vpop.f32.mrb[0].mxu0
    %v862 = vadd.f32 %v789, %v861
    %863 = vdwg.mxu0
    %v864 = vxor.u32 %v860, 2147483648
    %v865 = vxor.u32 %v862, 2147483648
    %v866 = vmul.f32 %v864, 1.442695
    %v867 = vpow.pop %v866
    %v868 = vmul.f32 %v865, 1.442695
    %v869 = vpow.pop %v868
    %v870 = vadd.f32 %v867, 1.0
    %v871 = vadd.f32 %v869, 1.0
    %v872 = vrcp.pop %v870
    %v873 = vmul.f32 1.0, %v872
    %v874 = vrcp.pop %v871
    %v875 = vmul.f32 1.0, %v874
    %v876 = vtanh.pop %v862
    %v877 = vmul.f32 %v873, %v778
    %879 = vrot.lane.b32.xlu0 %v876, 64
    %v880 = vpop.permute.xlu0 %879
    %v882 = vmul.f32 %v873, %v880
    %884 = vrot.lane.b32.xlu0 %v882, 64
    %v885 = vpop.permute.xlu0 %884
    %v887 = vadd.f32 %v877, %v885
    %v888 = vtanh.pop %v887
    %890 = vrot.lane.b32.xlu0 %v888, 64
    %v891 = vpop.permute.xlu0 %890
    %v893 = vmul.f32 %v875, %v891
    %s894 = smul.u32 6, 2
    %s895 = smul.addr %s894, 8
    %s896 = scalar_lea.vmem [#allocation2], %s895
    %v897 = vld [vmem:[%s896] sm:$0xff]
    %v898 = vld [vmem:[%s896 + $0x8] sm:$0xff]
    %v900 = vsel %vm244, %v893, 0
    %902 = vmatprep.subr.mxu0 %v224
    %903 = vmatpush1.msra.mxu0 %v223
    %904 = vmatprep.subr.mxu0 %v226
    %905 = vmatpush1.msra.mxu0 %v225
    %906 = vmatprep.subr.mxu0 %v228
    %907 = vmatpush1.msra.mxu0 %v227
    %908 = vmatprep.subr.mxu0 %v230
    %909 = vmatpush1.msra.mxu0 %v229
    %910 = vmatprep.subr.mxu0 %v232
    %911 = vmatpush1.msra.mxu0 %v231
    %912 = vmatprep.subr.mxu0 %v234
    %913 = vmatpush1.msra.mxu0 %v233
    %914 = vmatprep.subr.mxu0 %v236
    %915 = vmatpush1.msra.mxu0 %v235
    %916 = vmatprep.subr.mxu0 %v238
    %917 = vmatpush1.msra.mxu0 %v237
    %918 = vmatprep.subr.mxu0 0.0
    %919 = vmatpush1.msra.mxu0 0.0
    %920 = vmatprep.subr.mxu0 0.0
    %921 = vmatpush1.msra.mxu0 0.0
    %922 = vmatprep.subr.mxu0 0.0
    %923 = vmatpush1.msra.mxu0 0.0
    %924 = vmatprep.subr.mxu0 0.0
    %925 = vmatpush1.msra.mxu0 0.0
    %926 = vmatprep.subr.mxu0 0.0
    %927 = vmatpush1.msra.mxu0 0.0
    %928 = vmatprep.subr.mxu0 0.0
    %929 = vmatpush1.msra.mxu0 0.0
    %930 = vmatprep.subr.mxu0 0.0
    %931 = vmatpush1.msra.mxu0 0.0
    %932 = vmatprep.subr.mxu0 0.0
    %933 = vmatpush1.msra.mxu0 0.0
    %934 = vmatprep.subr.mxu0 0.0
    %935 = vmatpush1.msra.mxu0 0.0
    %936 = vmatprep.subr.mxu0 0.0
    %937 = vmatpush1.msra.mxu0 0.0
    %938 = vmatprep.subr.mxu0 0.0
    %939 = vmatpush1.msra.mxu0 0.0
    %940 = vmatprep.subr.mxu0 0.0
    %941 = vmatpush1.msra.mxu0 0.0
    %942 = vmatprep.subr.mxu0 0.0
    %943 = vmatpush1.msra.mxu0 0.0
    %944 = vmatprep.subr.mxu0 0.0
    %945 = vmatpush1.msra.mxu0 0.0
    %946 = vmatprep.subr.mxu0 0.0
    %947 = vmatpush1.msra.mxu0 0.0
    %948 = vmatprep.subr.mxu0 0.0
    %949 = vmatpush1.msra.mxu0 0.0
    %950 = vmatprep.subr.mxu0 0.0
    %951 = vmatpush1.msra.mxu0 0.0
    %952 = vmatprep.subr.mxu0 0.0
    %953 = vmatpush1.msra.mxu0 0.0
    %954 = vmatprep.subr.mxu0 0.0
    %955 = vmatpush1.msra.mxu0 0.0
    %956 = vmatprep.subr.mxu0 0.0
    %957 = vmatpush1.msra.mxu0 0.0
    %958 = vmatprep.subr.mxu0 0.0
    %959 = vmatpush1.msra.mxu0 0.0
    %960 = vmatprep.subr.mxu0 0.0
    %961 = vmatpush1.msra.mxu0 0.0
    %962 = vmatprep.subr.mxu0 0.0
    %963 = vmatpush1.msra.mxu0 0.0
    %964 = vmatprep.subr.mxu0 0.0
    %965 = vmatpush1.msra.mxu0 0.0
    %966 = vmatprep.mubr.f32.mxu0 0.0
    %967 = vmatmul.mubr.f32.gmra.mrb[0].mxu0 %v900
    %v968 = vpop.f32.mrb[0].mxu0
    %v969 = vadd.f32 %v897, %v968
    %v970 = vpop.f32.mrb[0].mxu0
    %v971 = vadd.f32 %v898, %v970
    %972 = vdwg.mxu0
    %v973 = vxor.u32 %v969, 2147483648
    %v974 = vxor.u32 %v971, 2147483648
    %v975 = vmul.f32 %v973, 1.442695
    %v976 = vpow.pop %v975
    %v977 = vmul.f32 %v974, 1.442695
    %v978 = vpow.pop %v977
    %v979 = vadd.f32 %v976, 1.0
    %v980 = vadd.f32 %v978, 1.0
    %v981 = vrcp.pop %v979
    %v982 = vmul.f32 1.0, %v981
    %v983 = vrcp.pop %v980
    %v984 = vmul.f32 1.0, %v983
    %v985 = vtanh.pop %v971
    %v986 = vmul.f32 %v982, %v887
    %988 = vrot.lane.b32.xlu0 %v985, 64
    %v989 = vpop.permute.xlu0 %988
    %v991 = vmul.f32 %v982, %v989
    %993 = vrot.lane.b32.xlu0 %v991, 64
    %v994 = vpop.permute.xlu0 %993
    %v996 = vadd.f32 %v986, %v994
    %v997 = vtanh.pop %v996
    %999 = vrot.lane.b32.xlu0 %v997, 64
    %v1000 = vpop.permute.xlu0 %999
    %v1002 = vmul.f32 %v984, %v1000
    %s1003 = smul.u32 7, 2
    %s1004 = smul.addr %s1003, 8
    %s1005 = scalar_lea.vmem [#allocation2], %s1004
    %v1006 = vld [vmem:[%s1005] sm:$0xff]
    %v1007 = vld [vmem:[%s1005 + $0x8] sm:$0xff]
    %v1009 = vsel %vm244, %v1002, 0
    %1011 = vmatprep.subr.mxu0 %v224
    %1012 = vmatpush1.msra.mxu0 %v223
    %1013 = vmatprep.subr.mxu0 %v226
    %1014 = vmatpush1.msra.mxu0 %v225
    %1015 = vmatprep.subr.mxu0 %v228
    %1016 = vmatpush1.msra.mxu0 %v227
    %1017 = vmatprep.subr.mxu0 %v230
    %1018 = vmatpush1.msra.mxu0 %v229
    %1019 = vmatprep.subr.mxu0 %v232
    %1020 = vmatpush1.msra.mxu0 %v231
    %1021 = vmatprep.subr.mxu0 %v234
    %1022 = vmatpush1.msra.mxu0 %v233
    %1023 = vmatprep.subr.mxu0 %v236
    %1024 = vmatpush1.msra.mxu0 %v235
    %1025 = vmatprep.subr.mxu0 %v238
    %1026 = vmatpush1.msra.mxu0 %v237
    %1027 = vmatprep.subr.mxu0 0.0
    %1028 = vmatpush1.msra.mxu0 0.0
    %1029 = vmatprep.subr.mxu0 0.0
    %1030 = vmatpush1.msra.mxu0 0.0
    %1031 = vmatprep.subr.mxu0 0.0
    %1032 = vmatpush1.msra.mxu0 0.0
    %1033 = vmatprep.subr.mxu0 0.0
    %1034 = vmatpush1.msra.mxu0 0.0
    %1035 = vmatprep.subr.mxu0 0.0
    %1036 = vmatpush1.msra.mxu0 0.0
    %1037 = vmatprep.subr.mxu0 0.0
    %1038 = vmatpush1.msra.mxu0 0.0
    %1039 = vmatprep.subr.mxu0 0.0
    %1040 = vmatpush1.msra.mxu0 0.0
    %1041 = vmatprep.subr.mxu0 0.0
    %1042 = vmatpush1.msra.mxu0 0.0
    %1043 = vmatprep.subr.mxu0 0.0
    %1044 = vmatpush1.msra.mxu0 0.0
    %1045 = vmatprep.subr.mxu0 0.0
    %1046 = vmatpush1.msra.mxu0 0.0
    %1047 = vmatprep.subr.mxu0 0.0
    %1048 = vmatpush1.msra.mxu0 0.0
    %1049 = vmatprep.subr.mxu0 0.0
    %1050 = vmatpush1.msra.mxu0 0.0
    %1051 = vmatprep.subr.mxu0 0.0
    %1052 = vmatpush1.msra.mxu0 0.0
    %1053 = vmatprep.subr.mxu0 0.0
    %1054 = vmatpush1.msra.mxu0 0.0
    %1055 = vmatprep.subr.mxu0 0.0
    %1056 = vmatpush1.msra.mxu0 0.0
    %1057 = vmatprep.subr.mxu0 0.0
    %1058 = vmatpush1.msra.mxu0 0.0
    %1059 = vmatprep.subr.mxu0 0.0
    %1060 = vmatpush1.msra.mxu0 0.0
    %1061 = vmatprep.subr.mxu0 0.0
    %1062 = vmatpush1.msra.mxu0 0.0
    %1063 = vmatprep.subr.mxu0 0.0
    %1064 = vmatpush1.msra.mxu0 0.0
    %1065 = vmatprep.subr.mxu0 0.0
    %1066 = vmatpush1.msra.mxu0 0.0
    %1067 = vmatprep.subr.mxu0 0.0
    %1068 = vmatpush1.msra.mxu0 0.0
    %1069 = vmatprep.subr.mxu0 0.0
    %1070 = vmatpush1.msra.mxu0 0.0
    %1071 = vmatprep.subr.mxu0 0.0
    %1072 = vmatpush1.msra.mxu0 0.0
    %1073 = vmatprep.subr.mxu0 0.0
    %1074 = vmatpush1.msra.mxu0 0.0
    %1075 = vmatprep.mubr.f32.mxu0 0.0
    %1076 = vmatmul.mubr.f32.gmra.mrb[0].mxu0 %v1009
    %v1077 = vpop.f32.mrb[0].mxu0
    %v1078 = vadd.f32 %v1006, %v1077
    %v1079 = vpop.f32.mrb[0].mxu0
    %v1080 = vadd.f32 %v1007, %v1079
    %1081 = vdwg.mxu0
    %v1082 = vxor.u32 %v1078, 2147483648
    %v1083 = vxor.u32 %v1080, 2147483648
    %v1084 = vmul.f32 %v1082, 1.442695
    %v1085 = vpow.pop %v1084
    %v1086 = vmul.f32 %v1083, 1.442695
    %v1087 = vpow.pop %v1086
    %v1088 = vadd.f32 %v1085, 1.0
    %v1089 = vadd.f32 %v1087, 1.0
    %v1090 = vrcp.pop %v1088
    %v1091 = vmul.f32 1.0, %v1090
    %v1092 = vrcp.pop %v1089
    %v1093 = vmul.f32 1.0, %v1092
    %v1094 = vtanh.pop %v1080
    %v1095 = vmul.f32 %v1091, %v996
    %1097 = vrot.lane.b32.xlu0 %v1094, 64
    %v1098 = vpop.permute.xlu0 %1097
    %v1100 = vmul.f32 %v1091, %v1098
    %1102 = vrot.lane.b32.xlu0 %v1100, 64
    %v1103 = vpop.permute.xlu0 %1102
    %v1105 = vadd.f32 %v1095, %v1103
    %v1106 = vtanh.pop %v1105
    %1108 = vrot.lane.b32.xlu0 %v1106, 64
    %v1109 = vpop.permute.xlu0 %1108
    %v1111 = vmul.f32 %v1093, %v1109
    %v1112 = vld [vmem:[%s5] sm:$0xff]
    %v1113 = vld [vmem:[%s5 + $0x8] sm:$0xff]
    %v1114 = vld [vmem:[%s5 + $0x10] sm:$0xff]
    %v1115 = vld [vmem:[%s5 + $0x18] sm:$0xff]
    %v1116 = vld [vmem:[%s5 + $0x20] sm:$0xff]
    %v1117 = vld [vmem:[%s5 + $0x28] sm:$0xff]
    %v1118 = vld [vmem:[%s5 + $0x30] sm:$0xff]
    %v1119 = vld [vmem:[%s5 + $0x38] sm:$0xff]
    %v1120 = vld [vmem:[%s6] sm:$0x1]
    %v1122 = vlaneseq
    %v1123 = vshrl.u32 %v1122, 7
    %v1124 = vsub.s32 0, %v1123
    %v1125 = vrot.slane %v1120, %v1124
    %v1128 = vsel %vm244, %v1111, 0
    %1130 = vmatprep.subr.mxu0 0.0
    %1131 = vmatpush1.msra.mxu0 %v1112
    %1132 = vmatprep.subr.mxu0 0.0
    %1133 = vmatpush1.msra.mxu0 %v1113
    %1134 = vmatprep.subr.mxu0 0.0
    %1135 = vmatpush1.msra.mxu0 %v1114
    %1136 = vmatprep.subr.mxu0 0.0
    %1137 = vmatpush1.msra.mxu0 %v1115
    %1138 = vmatprep.subr.mxu0 0.0
    %1139 = vmatpush1.msra.mxu0 %v1116
    %1140 = vmatprep.subr.mxu0 0.0
    %1141 = vmatpush1.msra.mxu0 %v1117
    %1142 = vmatprep.subr.mxu0 0.0
    %1143 = vmatpush1.msra.mxu0 %v1118
    %1144 = vmatprep.subr.mxu0 0.0
    %1145 = vmatpush1.msra.mxu0 %v1119
    %1146 = vmatprep.subr.mxu0 0.0
    %1147 = vmatpush1.msra.mxu0 0.0
    %1148 = vmatprep.subr.mxu0 0.0
    %1149 = vmatpush1.msra.mxu0 0.0
    %1150 = vmatprep.subr.mxu0 0.0
    %1151 = vmatpush1.msra.mxu0 0.0
    %1152 = vmatprep.subr.mxu0 0.0
    %1153 = vmatpush1.msra.mxu0 0.0
    %1154 = vmatprep.subr.mxu0 0.0
    %1155 = vmatpush1.msra.mxu0 0.0
    %1156 = vmatprep.subr.mxu0 0.0
    %1157 = vmatpush1.msra.mxu0 0.0
    %1158 = vmatprep.subr.mxu0 0.0
    %1159 = vmatpush1.msra.mxu0 0.0
    %1160 = vmatprep.subr.mxu0 0.0
    %1161 = vmatpush1.msra.mxu0 0.0
    %1162 = vmatprep.subr.mxu0 0.0
    %1163 = vmatpush1.msra.mxu0 0.0
    %1164 = vmatprep.subr.mxu0 0.0
    %1165 = vmatpush1.msra.mxu0 0.0
    %1166 = vmatprep.subr.mxu0 0.0
    %1167 = vmatpush1.msra.mxu0 0.0
    %1168 = vmatprep.subr.mxu0 0.0
    %1169 = vmatpush1.msra.mxu0 0.0
    %1170 = vmatprep.subr.mxu0 0.0
    %1171 = vmatpush1.msra.mxu0 0.0
    %1172 = vmatprep.subr.mxu0 0.0
    %1173 = vmatpush1.msra.mxu0 0.0
    %1174 = vmatprep.subr.mxu0 0.0
    %1175 = vmatpush1.msra.mxu0 0.0
    %1176 = vmatprep.subr.mxu0 0.0
    %1177 = vmatpush1.msra.mxu0 0.0
    %1178 = vmatprep.subr.mxu0 0.0
    %1179 = vmatpush1.msra.mxu0 0.0
    %1180 = vmatprep.subr.mxu0 0.0
    %1181 = vmatpush1.msra.mxu0 0.0
    %1182 = vmatprep.subr.mxu0 0.0
    %1183 = vmatpush1.msra.mxu0 0.0
    %1184 = vmatprep.subr.mxu0 0.0
    %1185 = vmatpush1.msra.mxu0 0.0
    %1186 = vmatprep.subr.mxu0 0.0
    %1187 = vmatpush1.msra.mxu0 0.0
    %1188 = vmatprep.subr.mxu0 0.0
    %1189 = vmatpush1.msra.mxu0 0.0
    %1190 = vmatprep.subr.mxu0 0.0
    %1191 = vmatpush1.msra.mxu0 0.0
    %1192 = vmatprep.subr.mxu0 0.0
    %1193 = vmatpush1.msra.mxu0 0.0
    %1194 = vmatprep.mubr.f32.mxu0 0.0
    %1195 = vmatmul.mubr.f32.gmra.mrb[0].mxu0 %v1128
    %v1196 = vpop.f32.mrb[0].mxu0
    %v1197 = vadd.f32 %v1125, %v1196
    %v1198 = vpop.f32.mrb[0].mxu0
    %1199 = vdwg.mxu0
    %v1200 = vtanh.pop %v1197
    %v1201 = vld [vmem:[%s5] sm:$0xff]
    %v1202 = vld [vmem:[%s5 + $0x8] sm:$0xff]
    %v1203 = vld [vmem:[%s5 + $0x10] sm:$0xff]
    %v1204 = vld [vmem:[%s5 + $0x18] sm:$0xff]
    %1209 = vrot.lane.b32.xlu0 %v1201, 96
    %v1210 = vpop.permute.xlu0 %1209
    %1211 = vrot.lane.b32.xlu0 %v1202, 96
    %v1212 = vpop.permute.xlu0 %1211
    %1213 = vrot.lane.b32.xlu0 %v1203, 96
    %v1214 = vpop.permute.xlu0 %1213
    %1215 = vrot.lane.b32.xlu0 %v1204, 96
    %v1216 = vpop.permute.xlu0 %1215
    %1221 = vrot.lane.b32.xlu0 %v1125, 96
    %v1222 = vpop.permute.xlu0 %1221
    %vm1224 = vcmask 261120
    %v1226 = vsel %vm1224, %v1200, 0
    %1228 = vmatprep.subr.mxu0 0.0
    %1229 = vmatpush1.msra.mxu0 %v1210
    %1230 = vmatprep.subr.mxu0 0.0
    %1231 = vmatpush1.msra.mxu0 %v1212
    %1232 = vmatprep.subr.mxu0 0.0
    %1233 = vmatpush1.msra.mxu0 %v1214
    %1234 = vmatprep.subr.mxu0 0.0
    %1235 = vmatpush1.msra.mxu0 %v1216
    %1236 = vmatprep.subr.mxu0 0.0
    %1237 = vmatpush1.msra.mxu0 0.0
    %1238 = vmatprep.subr.mxu0 0.0
    %1239 = vmatpush1.msra.mxu0 0.0
    %1240 = vmatprep.subr.mxu0 0.0
    %1241 = vmatpush1.msra.mxu0 0.0
    %1242 = vmatprep.subr.mxu0 0.0
    %1243 = vmatpush1.msra.mxu0 0.0
    %1244 = vmatprep.subr.mxu0 0.0
    %1245 = vmatpush1.msra.mxu0 0.0
    %1246 = vmatprep.subr.mxu0 0.0
    %1247 = vmatpush1.msra.mxu0 0.0
    %1248 = vmatprep.subr.mxu0 0.0
    %1249 = vmatpush1.msra.mxu0 0.0
    %1250 = vmatprep.subr.mxu0 0.0
    %1251 = vmatpush1.msra.mxu0 0.0
    %1252 = vmatprep.subr.mxu0 0.0
    %1253 = vmatpush1.msra.mxu0 0.0
    %1254 = vmatprep.subr.mxu0 0.0
    %1255 = vmatpush1.msra.mxu0 0.0
    %1256 = vmatprep.subr.mxu0 0.0
    %1257 = vmatpush1.msra.mxu0 0.0
    %1258 = vmatprep.subr.mxu0 0.0
    %1259 = vmatpush1.msra.mxu0 0.0
    %1260 = vmatprep.subr.mxu0 0.0
    %1261 = vmatpush1.msra.mxu0 0.0
    %1262 = vmatprep.subr.mxu0 0.0
    %1263 = vmatpush1.msra.mxu0 0.0
    %1264 = vmatprep.subr.mxu0 0.0
    %1265 = vmatpush1.msra.mxu0 0.0
    %1266 = vmatprep.subr.mxu0 0.0
    %1267 = vmatpush1.msra.mxu0 0.0
    %1268 = vmatprep.subr.mxu0 0.0
    %1269 = vmatpush1.msra.mxu0 0.0
    %1270 = vmatprep.subr.mxu0 0.0
    %1271 = vmatpush1.msra.mxu0 0.0
    %1272 = vmatprep.subr.mxu0 0.0
    %1273 = vmatpush1.msra.mxu0 0.0
    %1274 = vmatprep.subr.mxu0 0.0
    %1275 = vmatpush1.msra.mxu0 0.0
    %1276 = vmatprep.subr.mxu0 0.0
    %1277 = vmatpush1.msra.mxu0 0.0
    %1278 = vmatprep.subr.mxu0 0.0
    %1279 = vmatpush1.msra.mxu0 0.0
    %1280 = vmatprep.subr.mxu0 0.0
    %1281 = vmatpush1.msra.mxu0 0.0
    %1282 = vmatprep.subr.mxu0 0.0
    %1283 = vmatpush1.msra.mxu0 0.0
    %1284 = vmatprep.subr.mxu0 0.0
    %1285 = vmatpush1.msra.mxu0 0.0
    %1286 = vmatprep.subr.mxu0 0.0
    %1287 = vmatpush1.msra.mxu0 0.0
    %1288 = vmatprep.subr.mxu0 0.0
    %1289 = vmatpush1.msra.mxu0 0.0
    %1290 = vmatprep.subr.mxu0 0.0
    %1291 = vmatpush1.msra.mxu0 0.0
    %1292 = vmatprep.mubr.f32.mxu0 0.0
    %1293 = vmatmul.mubr.f32.gmra.mrb[0].mxu0 %v1226
    %v1294 = vpop.f32.mrb[0].mxu0
    %v1295 = vadd.f32 %v1222, %v1294
    %v1296 = vpop.f32.mrb[0].mxu0
    %1297 = vdwg.mxu0
    %v1298 = vtanh.pop %v1295
    %v1299 = vld [vmem:[%s1] sm:$0xff]
    %v1300 = vld [vmem:[%s5] sm:$0xff]
    %v1301 = vld [vmem:[%s5 + $0x8] sm:$0xf]
    %1304 = vrot.lane.b32.xlu0 %v1300, 84
    %v1305 = vpop.permute.xlu0 %1304
    %1306 = vrot.lane.b32.xlu0 %v1301, 84
    %v1307 = vpop.permute.xlu0 %1306
    %1309 = vrot.lane.b32.xlu0 %v1125, 84
    %v1310 = vpop.permute.xlu0 %1309
    %vm1312 = vcmask 97280
    %v1314 = vsel %vm1312, %v1298, 0
    %v1316 = vsel %vm89, %v1307, 0
    %1318 = vmatprep.subr.mxu0 0.0
    %1319 = vmatpush1.msra.mxu0 %v1305
    %1320 = vmatprep.subr.mxu0 0.0
    %1321 = vmatpush1.msra.mxu0 %v1316
    %1322 = vmatprep.subr.mxu0 0.0
    %1323 = vmatpush1.msra.mxu0 0.0
    %1324 = vmatprep.subr.mxu0 0.0
    %1325 = vmatpush1.msra.mxu0 0.0
    %1326 = vmatprep.subr.mxu0 0.0
    %1327 = vmatpush1.msra.mxu0 0.0
    %1328 = vmatprep.subr.mxu0 0.0
    %1329 = vmatpush1.msra.mxu0 0.0
    %1330 = vmatprep.subr.mxu0 0.0
    %1331 = vmatpush1.msra.mxu0 0.0
    %1332 = vmatprep.subr.mxu0 0.0
    %1333 = vmatpush1.msra.mxu0 0.0
    %1334 = vmatprep.subr.mxu0 0.0
    %1335 = vmatpush1.msra.mxu0 0.0
    %1336 = vmatprep.subr.mxu0 0.0
    %1337 = vmatpush1.msra.mxu0 0.0
    %1338 = vmatprep.subr.mxu0 0.0
    %1339 = vmatpush1.msra.mxu0 0.0
    %1340 = vmatprep.subr.mxu0 0.0
    %1341 = vmatpush1.msra.mxu0 0.0
    %1342 = vmatprep.subr.mxu0 0.0
    %1343 = vmatpush1.msra.mxu0 0.0
    %1344 = vmatprep.subr.mxu0 0.0
    %1345 = vmatpush1.msra.mxu0 0.0
    %1346 = vmatprep.subr.mxu0 0.0
    %1347 = vmatpush1.msra.mxu0 0.0
    %1348 = vmatprep.subr.mxu0 0.0
    %1349 = vmatpush1.msra.mxu0 0.0
    %1350 = vmatprep.subr.mxu0 0.0
    %1351 = vmatpush1.msra.mxu0 0.0
    %1352 = vmatprep.subr.mxu0 0.0
    %1353 = vmatpush1.msra.mxu0 0.0
    %1354 = vmatprep.subr.mxu0 0.0
    %1355 = vmatpush1.msra.mxu0 0.0
    %1356 = vmatprep.subr.mxu0 0.0
    %1357 = vmatpush1.msra.mxu0 0.0
    %1358 = vmatprep.subr.mxu0 0.0
    %1359 = vmatpush1.msra.mxu0 0.0
    %1360 = vmatprep.subr.mxu0 0.0
    %1361 = vmatpush1.msra.mxu0 0.0
    %1362 = vmatprep.subr.mxu0 0.0
    %1363 = vmatpush1.msra.mxu0 0.0
    %1364 = vmatprep.subr.mxu0 0.0
    %1365 = vmatpush1.msra.mxu0 0.0
    %1366 = vmatprep.subr.mxu0 0.0
    %1367 = vmatpush1.msra.mxu0 0.0
    %1368 = vmatprep.subr.mxu0 0.0
    %1369 = vmatpush1.msra.mxu0 0.0
    %1370 = vmatprep.subr.mxu0 0.0
    %1371 = vmatpush1.msra.mxu0 0.0
    %1372 = vmatprep.subr.mxu0 0.0
    %1373 = vmatpush1.msra.mxu0 0.0
    %1374 = vmatprep.subr.mxu0 0.0
    %1375 = vmatpush1.msra.mxu0 0.0
    %1376 = vmatprep.subr.mxu0 0.0
    %1377 = vmatpush1.msra.mxu0 0.0
    %1378 = vmatprep.subr.mxu0 0.0
    %1379 = vmatpush1.msra.mxu0 0.0
    %1380 = vmatprep.subr.mxu0 0.0
    %1381 = vmatpush1.msra.mxu0 0.0
    %1382 = vmatprep.mubr.f32.mxu0 0.0
    %1383 = vmatmul.mubr.f32.gmra.mrb[0].mxu0 %v1314
    %v1384 = vpop.f32.mrb[0].mxu0
    %v1385 = vadd.f32 %v1310, %v1384
    %v1386 = vpop.f32.mrb[0].mxu0
    %1387 = vdwg.mxu0
    %vm1388 = vcmask 64512
    %v1390 = vsel %vm1388, %v1299, 0
    %1392 = vmatprep.subr.mxu0 0.0
    %1393 = vmatpush1.msra.mxu0 %v1385
    %1394 = vmatprep.subr.mxu0 0.0
    %1395 = vmatpush1.msra.mxu0 0.0
    %1396 = vmatprep.subr.mxu0 0.0
    %1397 = vmatpush1.msra.mxu0 0.0
    %1398 = vmatprep.subr.mxu0 0.0
    %1399 = vmatpush1.msra.mxu0 0.0
    %1400 = vmatprep.subr.mxu0 0.0
    %1401 = vmatpush1.msra.mxu0 0.0
    %1402 = vmatprep.subr.mxu0 0.0
    %1403 = vmatpush1.msra.mxu0 0.0
    %1404 = vmatprep.subr.mxu0 0.0
    %1405 = vmatpush1.msra.mxu0 0.0
    %1406 = vmatprep.subr.mxu0 0.0
    %1407 = vmatpush1.msra.mxu0 0.0
    %1408 = vmatprep.subr.mxu0 0.0
    %1409 = vmatpush1.msra.mxu0 0.0
    %1410 = vmatprep.subr.mxu0 0.0
    %1411 = vmatpush1.msra.mxu0 0.0
    %1412 = vmatprep.subr.mxu0 0.0
    %1413 = vmatpush1.msra.mxu0 0.0
    %1414 = vmatprep.subr.mxu0 0.0
    %1415 = vmatpush1.msra.mxu0 0.0
    %1416 = vmatprep.subr.mxu0 0.0
    %1417 = vmatpush1.msra.mxu0 0.0
    %1418 = vmatprep.subr.mxu0 0.0
    %1419 = vmatpush1.msra.mxu0 0.0
    %1420 = vmatprep.subr.mxu0 0.0
    %1421 = vmatpush1.msra.mxu0 0.0
    %1422 = vmatprep.subr.mxu0 0.0
    %1423 = vmatpush1.msra.mxu0 0.0
    %1424 = vmatprep.subr.mxu0 0.0
    %1425 = vmatpush1.msra.mxu0 0.0
    %1426 = vmatprep.subr.mxu0 0.0
    %1427 = vmatpush1.msra.mxu0 0.0
    %1428 = vmatprep.subr.mxu0 0.0
    %1429 = vmatpush1.msra.mxu0 0.0
    %1430 = vmatprep.subr.mxu0 0.0
    %1431 = vmatpush1.msra.mxu0 0.0
    %1432 = vmatprep.subr.mxu0 0.0
    %1433 = vmatpush1.msra.mxu0 0.0
    %1434 = vmatprep.subr.mxu0 0.0
    %1435 = vmatpush1.msra.mxu0 0.0
    %1436 = vmatprep.subr.mxu0 0.0
    %1437 = vmatpush1.msra.mxu0 0.0
    %1438 = vmatprep.subr.mxu0 0.0
    %1439 = vmatpush1.msra.mxu0 0.0
    %1440 = vmatprep.subr.mxu0 0.0
    %1441 = vmatpush1.msra.mxu0 0.0
    %1442 = vmatprep.subr.mxu0 0.0
    %1443 = vmatpush1.msra.mxu0 0.0
    %1444 = vmatprep.subr.mxu0 0.0
    %1445 = vmatpush1.msra.mxu0 0.0
    %1446 = vmatprep.subr.mxu0 0.0
    %1447 = vmatpush1.msra.mxu0 0.0
    %1448 = vmatprep.subr.mxu0 0.0
    %1449 = vmatpush1.msra.mxu0 0.0
    %1450 = vmatprep.subr.mxu0 0.0
    %1451 = vmatpush1.msra.mxu0 0.0
    %1452 = vmatprep.subr.mxu0 0.0
    %1453 = vmatpush1.msra.mxu0 0.0
    %1454 = vmatprep.subr.mxu0 0.0
    %1455 = vmatpush1.msra.mxu0 0.0
    %1456 = vmatprep.mubr.f32.mxu0 0.0
    %1457 = vmatmul.mubr.f32.gmra.mrb[0].mxu0 %v1390
    %v1458 = vpop.f32.mrb[0].mxu0
    %v1459 = vadd.f32 0.0, %v1458
    %v1460 = vpop.f32.mrb[0].mxu0
    %1461 = vdwg.mxu0
    %v1462 = vmax.f32 %v1459, 0.0
    %1463 = vrot.lane.b32.xlu0 %v1300, 72
    %v1464 = vpop.permute.xlu0 %1463
    %1465 = vrot.lane.b32.xlu0 %v1301, 72
    %v1466 = vpop.permute.xlu0 %1465
    %1468 = vrot.lane.b32.xlu0 %v1125, 72
    %v1469 = vpop.permute.xlu0 %1468
    %v1472 = vsel %vm1312, %v1462, 0
    %v1474 = vsel %vm89, %v1466, 0
    %1476 = vmatprep.subr.mxu0 0.0
    %1477 = vmatpush1.msra.mxu0 %v1464
    %1478 = vmatprep.subr.mxu0 0.0
    %1479 = vmatpush1.msra.mxu0 %v1474
    %1480 = vmatprep.subr.mxu0 0.0
    %1481 = vmatpush1.msra.mxu0 0.0
    %1482 = vmatprep.subr.mxu0 0.0
    %1483 = vmatpush1.msra.mxu0 0.0
    %1484 = vmatprep.subr.mxu0 0.0
    %1485 = vmatpush1.msra.mxu0 0.0
    %1486 = vmatprep.subr.mxu0 0.0
    %1487 = vmatpush1.msra.mxu0 0.0
    %1488 = vmatprep.subr.mxu0 0.0
    %1489 = vmatpush1.msra.mxu0 0.0
    %1490 = vmatprep.subr.mxu0 0.0
    %1491 = vmatpush1.msra.mxu0 0.0
    %1492 = vmatprep.subr.mxu0 0.0
    %1493 = vmatpush1.msra.mxu0 0.0
    %1494 = vmatprep.subr.mxu0 0.0
    %1495 = vmatpush1.msra.mxu0 0.0
    %1496 = vmatprep.subr.mxu0 0.0
    %1497 = vmatpush1.msra.mxu0 0.0
    %1498 = vmatprep.subr.mxu0 0.0
    %1499 = vmatpush1.msra.mxu0 0.0
    %1500 = vmatprep.subr.mxu0 0.0
    %1501 = vmatpush1.msra.mxu0 0.0
    %1502 = vmatprep.subr.mxu0 0.0
    %1503 = vmatpush1.msra.mxu0 0.0
    %1504 = vmatprep.subr.mxu0 0.0
    %1505 = vmatpush1.msra.mxu0 0.0
    %1506 = vmatprep.subr.mxu0 0.0
    %1507 = vmatpush1.msra.mxu0 0.0
    %1508 = vmatprep.subr.mxu0 0.0
    %1509 = vmatpush1.msra.mxu0 0.0
    %1510 = vmatprep.subr.mxu0 0.0
    %1511 = vmatpush1.msra.mxu0 0.0
    %1512 = vmatprep.subr.mxu0 0.0
    %1513 = vmatpush1.msra.mxu0 0.0
    %1514 = vmatprep.subr.mxu0 0.0
    %1515 = vmatpush1.msra.mxu0 0.0
    %1516 = vmatprep.subr.mxu0 0.0
    %1517 = vmatpush1.msra.mxu0 0.0
    %1518 = vmatprep.subr.mxu0 0.0
    %1519 = vmatpush1.msra.mxu0 0.0
    %1520 = vmatprep.subr.mxu0 0.0
    %1521 = vmatpush1.msra.mxu0 0.0
    %1522 = vmatprep.subr.mxu0 0.0
    %1523 = vmatpush1.msra.mxu0 0.0
    %1524 = vmatprep.subr.mxu0 0.0
    %1525 = vmatpush1.msra.mxu0 0.0
    %1526 = vmatprep.subr.mxu0 0.0
    %1527 = vmatpush1.msra.mxu0 0.0
    %1528 = vmatprep.subr.mxu0 0.0
    %1529 = vmatpush1.msra.mxu0 0.0
    %1530 = vmatprep.subr.mxu0 0.0
    %1531 = vmatpush1.msra.mxu0 0.0
    %1532 = vmatprep.subr.mxu0 0.0
    %1533 = vmatpush1.msra.mxu0 0.0
    %1534 = vmatprep.subr.mxu0 0.0
    %1535 = vmatpush1.msra.mxu0 0.0
    %1536 = vmatprep.subr.mxu0 0.0
    %1537 = vmatpush1.msra.mxu0 0.0
    %1538 = vmatprep.subr.mxu0 0.0
    %1539 = vmatpush1.msra.mxu0 0.0
    %1540 = vmatprep.mubr.f32.mxu0 0.0
    %1541 = vmatmul.mubr.f32.gmra.mrb[0].mxu0 %v1472
    %v1542 = vpop.f32.mrb[0].mxu0
    %v1543 = vadd.f32 %v1469, %v1542
    %v1544 = vpop.f32.mrb[0].mxu0
    %1545 = vdwg.mxu0
    %1546 = vmatprep.subr.mxu0 0.0
    %1547 = vmatpush1.msra.mxu0 %v1543
    %1548 = vmatprep.subr.mxu0 0.0
    %1549 = vmatpush1.msra.mxu0 0.0
    %1550 = vmatprep.subr.mxu0 0.0
    %1551 = vmatpush1.msra.mxu0 0.0
    %1552 = vmatprep.subr.mxu0 0.0
    %1553 = vmatpush1.msra.mxu0 0.0
    %1554 = vmatprep.subr.mxu0 0.0
    %1555 = vmatpush1.msra.mxu0 0.0
    %1556 = vmatprep.subr.mxu0 0.0
    %1557 = vmatpush1.msra.mxu0 0.0
    %1558 = vmatprep.subr.mxu0 0.0
    %1559 = vmatpush1.msra.mxu0 0.0
    %1560 = vmatprep.subr.mxu0 0.0
    %1561 = vmatpush1.msra.mxu0 0.0
    %1562 = vmatprep.subr.mxu0 0.0
    %1563 = vmatpush1.msra.mxu0 0.0
    %1564 = vmatprep.subr.mxu0 0.0
    %1565 = vmatpush1.msra.mxu0 0.0
    %1566 = vmatprep.subr.mxu0 0.0
    %1567 = vmatpush1.msra.mxu0 0.0
    %1568 = vmatprep.subr.mxu0 0.0
    %1569 = vmatpush1.msra.mxu0 0.0
    %1570 = vmatprep.subr.mxu0 0.0
    %1571 = vmatpush1.msra.mxu0 0.0
    %1572 = vmatprep.subr.mxu0 0.0
    %1573 = vmatpush1.msra.mxu0 0.0
    %1574 = vmatprep.subr.mxu0 0.0
    %1575 = vmatpush1.msra.mxu0 0.0
    %1576 = vmatprep.subr.mxu0 0.0
    %1577 = vmatpush1.msra.mxu0 0.0
    %1578 = vmatprep.subr.mxu0 0.0
    %1579 = vmatpush1.msra.mxu0 0.0
    %1580 = vmatprep.subr.mxu0 0.0
    %1581 = vmatpush1.msra.mxu0 0.0
    %1582 = vmatprep.subr.mxu0 0.0
    %1583 = vmatpush1.msra.mxu0 0.0
    %1584 = vmatprep.subr.mxu0 0.0
    %1585 = vmatpush1.msra.mxu0 0.0
    %1586 = vmatprep.subr.mxu0 0.0
    %1587 = vmatpush1.msra.mxu0 0.0
    %1588 = vmatprep.subr.mxu0 0.0
    %1589 = vmatpush1.msra.mxu0 0.0
    %1590 = vmatprep.subr.mxu0 0.0
    %1591 = vmatpush1.msra.mxu0 0.0
    %1592 = vmatprep.subr.mxu0 0.0
    %1593 = vmatpush1.msra.mxu0 0.0
    %1594 = vmatprep.subr.mxu0 0.0
    %1595 = vmatpush1.msra.mxu0 0.0
    %1596 = vmatprep.subr.mxu0 0.0
    %1597 = vmatpush1.msra.mxu0 0.0
    %1598 = vmatprep.subr.mxu0 0.0
    %1599 = vmatpush1.msra.mxu0 0.0
    %1600 = vmatprep.subr.mxu0 0.0
    %1601 = vmatpush1.msra.mxu0 0.0
    %1602 = vmatprep.subr.mxu0 0.0
    %1603 = vmatpush1.msra.mxu0 0.0
    %1604 = vmatprep.subr.mxu0 0.0
    %1605 = vmatpush1.msra.mxu0 0.0
    %1606 = vmatprep.subr.mxu0 0.0
    %1607 = vmatpush1.msra.mxu0 0.0
    %1608 = vmatprep.subr.mxu0 0.0
    %1609 = vmatpush1.msra.mxu0 0.0
    %1610 = vmatprep.mubr.f32.mxu0 0.0
    %1611 = vmatmul.mubr.f32.gmra.mrb[0].mxu0 %v1390
    %v1612 = vpop.f32.mrb[0].mxu0
    %v1613 = vadd.f32 0.0, %v1612
    %v1614 = vpop.f32.mrb[0].mxu0
    %1615 = vdwg.mxu0
    %v1616 = vsel %vm1312, %v1613, -inf
    %1617 = vmax.xlane.f32.xlu0 %v1616
    %v1618 = vpop.xlane.xlu0 %1617
    %v1619 = vsub.f32 %v1613, %v1618
    %v1620 = vmul.f32 %v1619, 1.442695
    %v1621 = vpow.pop %v1620
    %v1622 = vsel %vm1312, %v1621, 0.0
    %1623 = vadd.xlane.f32.xlu0 %v1622
    %v1624 = vpop.xlane.xlu0 %1623
    %v1625 = vlog2.pop %v1624
    %v1626 = vmul.f32 %v1625, 0.6931472
    %v1627 = vadd.f32 %v1618, %v1626
    %v1628 = vsub.f32 %v1613, %v1627
    %1629 = vrot.lane.b32.xlu0 %v1300, 60
    %v1630 = vpop.permute.xlu0 %1629
    %1631 = vrot.lane.b32.xlu0 %v1301, 60
    %v1632 = vpop.permute.xlu0 %1631
    %1634 = vrot.lane.b32.xlu0 %v1125, 60
    %v1635 = vpop.permute.xlu0 %1634
    %v1638 = vsel %vm1312, %v1628, 0
    %v1640 = vsel %vm89, %v1632, 0
    %1642 = vmatprep.subr.mxu0 0.0
    %1643 = vmatpush1.msra.mxu0 %v1630
    %1644 = vmatprep.subr.mxu0 0.0
    %1645 = vmatpush1.msra.mxu0 %v1640
    %1646 = vmatprep.subr.mxu0 0.0
    %1647 = vmatpush1.msra.mxu0 0.0
    %1648 = vmatprep.subr.mxu0 0.0
    %1649 = vmatpush1.msra.mxu0 0.0
    %1650 = vmatprep.subr.mxu0 0.0
    %1651 = vmatpush1.msra.mxu0 0.0
    %1652 = vmatprep.subr.mxu0 0.0
    %1653 = vmatpush1.msra.mxu0 0.0
    %1654 = vmatprep.subr.mxu0 0.0
    %1655 = vmatpush1.msra.mxu0 0.0
    %1656 = vmatprep.subr.mxu0 0.0
    %1657 = vmatpush1.msra.mxu0 0.0
    %1658 = vmatprep.subr.mxu0 0.0
    %1659 = vmatpush1.msra.mxu0 0.0
    %1660 = vmatprep.subr.mxu0 0.0
    %1661 = vmatpush1.msra.mxu0 0.0
    %1662 = vmatprep.subr.mxu0 0.0
    %1663 = vmatpush1.msra.mxu0 0.0
    %1664 = vmatprep.subr.mxu0 0.0
    %1665 = vmatpush1.msra.mxu0 0.0
    %1666 = vmatprep.subr.mxu0 0.0
    %1667 = vmatpush1.msra.mxu0 0.0
    %1668 = vmatprep.subr.mxu0 0.0
    %1669 = vmatpush1.msra.mxu0 0.0
    %1670 = vmatprep.subr.mxu0 0.0
    %1671 = vmatpush1.msra.mxu0 0.0
    %1672 = vmatprep.subr.mxu0 0.0
    %1673 = vmatpush1.msra.mxu0 0.0
    %1674 = vmatprep.subr.mxu0 0.0
    %1675 = vmatpush1.msra.mxu0 0.0
    %1676 = vmatprep.subr.mxu0 0.0
    %1677 = vmatpush1.msra.mxu0 0.0
    %1678 = vmatprep.subr.mxu0 0.0
    %1679 = vmatpush1.msra.mxu0 0.0
    %1680 = vmatprep.subr.mxu0 0.0
    %1681 = vmatpush1.msra.mxu0 0.0
    %1682 = vmatprep.subr.mxu0 0.0
    %1683 = vmatpush1.msra.mxu0 0.0
    %1684 = vmatprep.subr.mxu0 0.0
    %1685 = vmatpush1.msra.mxu0 0.0
    %1686 = vmatprep.subr.mxu0 0.0
    %1687 = vmatpush1.msra.mxu0 0.0
    %1688 = vmatprep.subr.mxu0 0.0
    %1689 = vmatpush1.msra.mxu0 0.0
    %1690 = vmatprep.subr.mxu0 0.0
    %1691 = vmatpush1.msra.mxu0 0.0
    %1692 = vmatprep.subr.mxu0 0.0
    %1693 = vmatpush1.msra.mxu0 0.0
    %1694 = vmatprep.subr.mxu0 0.0
    %1695 = vmatpush1.msra.mxu0 0.0
    %1696 = vmatprep.subr.mxu0 0.0
    %1697 = vmatpush1.msra.mxu0 0.0
    %1698 = vmatprep.subr.mxu0 0.0
    %1699 = vmatpush1.msra.mxu0 0.0
    %1700 = vmatprep.subr.mxu0 0.0
    %1701 = vmatpush1.msra.mxu0 0.0
    %1702 = vmatprep.subr.mxu0 0.0
    %1703 = vmatpush1.msra.mxu0 0.0
    %1704 = vmatprep.subr.mxu0 0.0
    %1705 = vmatpush1.msra.mxu0 0.0
    %1706 = vmatprep.mubr.f32.mxu0 0.0
    %1707 = vmatmul.mubr.f32.gmra.mrb[0].mxu0 %v1638
    %v1708 = vpop.f32.mrb[0].mxu0
    %v1709 = vadd.f32 %v1635, %v1708
    %v1710 = vpop.f32.mrb[0].mxu0
    %1711 = vdwg.mxu0
    %1713 = vset.pattern.permute.xlu0 0
    %1714 = vperm.xlu0 %1713, %v1709
    %v1715 = vpop.permute.xlu0 %1714
    %v1717 = vadd.f32 %v1715, %v1298
    %1718 = vst.msk [vmem:[#allocation6] sm:$0xff] %vm1312, %v1717
    // Predicated region
    $region34: #{tpu_custom_call.1} parent=1 // pred_check
      _
    $region35: #{tpu_custom_call.1} parent=1 // pred_check_branch
      %1720 = sbr.rel (0) target = $region37
    $region36: #{tpu_custom_call.1} parent=1 // pred_region
      %s1722 = ssub.s32 128, 128
      %1723 = vsyncadd [#allocation5], %s1722
      %s1725 = sshll.u32 [#allocation6], 4
      %s1726 = int_to_ptr.vmem [resolvable:$true] %s1725
      %1728 = dma.vmem_to_hbm [thread:$0]  %s1726, 128, %s7, [#allocation5]
    $region37: #{tpu_custom_call.1} parent=1 // pred_fallthru
      _
    // Predicated region
    $region38: #{tpu_custom_call.1} parent=1 // pred_check
      _
    $region39: #{tpu_custom_call.1} parent=1 // pred_check_branch
      %1730 = sbr.rel (0) target = $region41
    $region40: #{tpu_custom_call.1} parent=1 // pred_region
      %1731 = dma.done [#allocation5], 128
    $region41: #{tpu_custom_call.1} parent=1 // pred_fallthru
      _
    %1732 = vsyncpa [#allocation4], 1
    %1733 = vsyncpa [#allocation5], 1

</llo_original>
